<compile_context>
chip_gen: v7x
topology: tpu7x:2x2x1
jax: 0.10.0
libtpu: 0.0.40
codegen_flags: <defaults>
</compile_context>

<pallas_src>
import jax
import jax.numpy as jnp
from jax.experimental import pallas as pl
from jax.experimental.pallas import tpu as pltpu


def get_hw(size):
    if isinstance(size, int):
        return (size, size)
    return tuple(size)


def _cdiv(a, b):
    return -(-a // b)


def _choose_tile_oh(oh, ow, batch):
    # Mem-bound kernels want big M tiles (~512 patch rows per step), but keep
    # the static unroll bounded (<= 16 output-image rows) and leave >= 2 grid
    # steps when B == 1 so both v7x TensorCores get work (v5e/v6e: single TC).
    target_rows = 512
    tile = max(1, min(oh, target_rows // max(ow, 1), 16))
    if batch == 1 and oh >= 2:
        tile = min(tile, _cdiv(oh, 2))
    return tile


def _make_kernel(tile_oh, kh, sh):
    """Builds the kernel for one (batch, row-tile) grid step."""

    def kernel(r_ref, w_ref, pos_ref, o_ref):
        # r_ref:   (1, Hp, ow, C*kw)   per-batch row patches (VMEM-resident across t)
        # w_ref:   (kh, C*kw, E)       conv weight, resident across the whole grid
        # pos_ref: (tile_oh, ow, E)    positional rows with conv bias folded in (f32)
        # o_ref:   (1, tile_oh, ow, E) output tile
        t = pl.program_id(1)
        base = t * (tile_oh * sh)
        for ii in range(tile_oh):            # static unroll (tile_oh <= 16)
            row0 = base + ii * sh
            acc = pos_ref[ii]                # (ow, E) f32 epilogue term
            for dy in range(kh):             # static unroll over kernel rows
                acc = acc + jnp.dot(r_ref[0, row0 + dy], w_ref[dy],
                                    preferred_element_type=jnp.float32)
            o_ref[0, ii] = acc.astype(o_ref.dtype)

    return kernel


class ImageWPosEncPallas:
    """Mirror of the PyTorch ImageWPosEnc module; forward hot path in Pallas."""

    def __init__(self, image_size=16, in_channels=4, patch_size=8,
                 embed_size=32, stride=4, padding=0, key=None,
                 compute_dtype=jnp.float32):
        ih, iw = get_hw(image_size)
        kh, kw = get_hw(patch_size)
        sh, sw = get_hw(stride)
        ph, pw = get_hw(padding)
        self.ih, self.iw = ih, iw
        self.kh, self.kw = kh, kw
        self.sh, self.sw = sh, sw
        self.ph, self.pw = ph, pw
        self.in_channels = in_channels
        self.embed_size = embed_size
        self.compute_dtype = compute_dtype
        oh = (ih + 2 * ph - kh) // sh + 1
        ow = (iw + 2 * pw - kw) // sw + 1
        self.out_image_size = (oh, ow)
        self.num_embedding = oh * ow

        # Deterministic parameter init (synthetic; no checkpoint loading).
        if key is None:
            key = jax.random.PRNGKey(0)
        k_w, k_b, k_pos, k_cls = jax.random.split(key, 4)
        fan_in = in_channels * kh * kw
        bound = 1.0 / (fan_in ** 0.5)
        # Conv2d weight: (out_channels, in_channels, kh, kw)
        self.conv_w = jax.random.uniform(
            k_w, (embed_size, in_channels, kh, kw),
            minval=-bound, maxval=bound, dtype=jnp.float32)
        self.conv_b = jax.random.uniform(
            k_b, (embed_size,), minval=-bound, maxval=bound, dtype=jnp.float32)
        # nn.Parameter(torch.rand(...)) -> uniform [0, 1)
        self.pos_encoding = jax.random.uniform(
            k_pos, (1, self.num_embedding + 1, embed_size), dtype=jnp.float32)
        self.cls_token = jax.random.uniform(
            k_cls, (1, 1, embed_size), dtype=jnp.float32)

    def __call__(self, x):
        # x: (B, C, H, W) float32 (NCHW, matching PyTorch)
        B = x.shape[0]
        oh, ow = self.out_image_size
        E = self.embed_size
        C, kh, kw = self.in_channels, self.kh, self.kw
        sh, sw, ph, pw = self.sh, self.sw, self.ph, self.pw
        ckw = C * kw
        N = self.num_embedding

        tile_oh = _choose_tile_oh(oh, ow, B)
        n_t = _cdiv(oh, tile_oh)
        oh_pad = n_t * tile_oh

        # Rows of R needed by the last row-tile; fold any extra H padding into
        # the patch-extraction op so no separate pad pass touches R.
        h_needed = (oh_pad - 1) * sh + kh
        extra_h = max(0, h_needed - (self.ih + 2 * ph))
        hp = self.ih + 2 * ph + extra_h

        # --- row patches: a single fused XLA op, feature order (c, dx) c-major.
        xc = x.astype(self.compute_dtype)
        r = jax.lax.conv_general_dilated_patches(
            xc,
            filter_shape=(1, kw),
            window_strides=(1, sw),
            padding=((ph, ph + extra_h), (pw, pw)),
            dimension_numbers=("NCHW", "OIHW", "NHWC"))      # (B, hp, ow, C*kw)

        # Weight (E, C, kh, kw) -> (kh, C*kw, E), matching the (c, dx) order.
        w_k = jnp.transpose(self.conv_w, (2, 1, 3, 0)).reshape(kh, ckw, E)
        w_k = w_k.astype(self.compute_dtype)

        # Conv bias folded into the batch-invariant positional patch rows (f32).
        pos = self.pos_encoding.reshape(N + 1, E)
        pos_rows = (pos[1:] + self.conv_b[None, :]).reshape(oh, ow, E)
        if oh_pad > oh:
            pos_rows = jnp.pad(pos_rows, ((0, oh_pad - oh), (0, 0), (0, 0)))

        itemsize = jnp.dtype(self.compute_dtype).itemsize
        cost = pl.CostEstimate(
            flops=2 * B * oh_pad * ow * kh * ckw * E,
            transcendentals=0,
            bytes_accessed=(B * hp * ow * ckw * itemsize
                            + kh * ckw * E * itemsize
                            + 2 * B * oh_pad * ow * E * 4))

        out4 = pl.pallas_call(
            _make_kernel(tile_oh, kh, sh),
            out_shape=jax.ShapeDtypeStruct((B, oh_pad, ow, E), jnp.float32),
            grid=(B, n_t),
            in_specs=[
                # per-batch R block, resident across the row-tile axis
                pl.BlockSpec((1, hp, ow, ckw), lambda b, t: (b, 0, 0, 0)),
                # weight, resident across the whole grid
                pl.BlockSpec((kh, ckw, E), lambda b, t: (0, 0, 0)),
                # pos + bias, batch-invariant index_map (no per-batch tiling)
                pl.BlockSpec((tile_oh, ow, E), lambda b, t: (t, 0, 0)),
            ],
            out_specs=pl.BlockSpec((1, tile_oh, ow, E),
                                   lambda b, t: (b, t, 0, 0)),
            compiler_params=pltpu.CompilerParams(
                dimension_semantics=("parallel", "parallel")),
            cost_estimate=cost,
        )(r, w_k, pos_rows)

        patch_emb = out4.reshape(B, oh_pad * ow, E)[:, :N]

        # cls row is batch-invariant: compute once in XLA and broadcast instead
        # of issuing a 1-row masked store inside the kernel.
        cls_row = self.cls_token.reshape(1, 1, E) + pos[0][None, None, :]
        cls_rows = jnp.broadcast_to(cls_row, (B, 1, E))
        return jnp.concatenate([cls_rows, patch_emb], axis=1)  # (B, N+1, E)


def reference_forward(mod: ImageWPosEncPallas, x):
    """Pure-JAX reference matching the PyTorch module semantics."""
    conv = jax.lax.conv_general_dilated(
        x, mod.conv_w,
        window_strides=(mod.sh, mod.sw),
        padding=((mod.ph, mod.ph), (mod.pw, mod.pw)),
        dimension_numbers=("NCHW", "OIHW", "NCHW"))
    conv = conv + mod.conv_b[None, :, None, None]
    B, E, H, W = conv.shape
    pe = jnp.transpose(conv, (0, 2, 3, 1)).reshape(B, H * W, E)
    cls = jnp.broadcast_to(mod.cls_token, (B, 1, E))
    patch_cls = jnp.concatenate([cls, pe], axis=1)
    return patch_cls + mod.pos_encoding


if __name__ == "__main__":
    key = jax.random.PRNGKey(0)
    k_param, k_param2, k_x, k_x2 = jax.random.split(key, 4)

    # Config 1: B=2, C=4, 16x16 image, patch 8, stride 4 -> N=9, E=32.
    B, C, H, W = 2, 4, 16, 16
    mod = ImageWPosEncPallas(image_size=(H, W), in_channels=C, patch_size=8,
                             embed_size=32, stride=4, padding=0, key=k_param)
    x = jax.random.normal(k_x, (B, C, H, W), dtype=jnp.float32)

    out = jax.block_until_ready(jax.jit(mod.__call__)(x))
    ref = jax.block_until_ready(reference_forward(mod, x))
    assert out.shape == (B, mod.num_embedding + 1, mod.embed_size), out.shape
    assert jnp.allclose(out, ref, atol=1e-4, rtol=1e-4), (
        float(jnp.max(jnp.abs(out - ref))))

    # Config 2: B=1, asymmetric 24x16 image -> exercises the multi-row-tile grid
    # (n_t > 1), the oh padding path and the dynamic row base.
    mod2 = ImageWPosEncPallas(image_size=(24, 16), in_channels=C, patch_size=8,
                              embed_size=32, stride=4, padding=0, key=k_param2)
    x2 = jax.random.normal(k_x2, (1, C, 24, 16), dtype=jnp.float32)
    out2 = jax.block_until_ready(jax.jit(mod2.__call__)(x2))
    ref2 = jax.block_until_ready(reference_forward(mod2, x2))
    assert out2.shape == (1, mod2.num_embedding + 1, mod2.embed_size), out2.shape
    assert jnp.allclose(out2, ref2, atol=1e-4, rtol=1e-4), (
        float(jnp.max(jnp.abs(out2 - ref2))))

    # bf16 MXU-operand path (f32 accumulation + f32 epilogue): looser tolerance.
    mod_bf16 = ImageWPosEncPallas(image_size=(H, W), in_channels=C, patch_size=8,
                                  embed_size=32, stride=4, padding=0, key=k_param,
                                  compute_dtype=jnp.bfloat16)
    out_bf16 = jax.block_until_ready(jax.jit(mod_bf16.__call__)(x))
    assert jnp.allclose(out_bf16, ref, atol=5e-2, rtol=5e-2), (
        float(jnp.max(jnp.abs(out_bf16 - ref))))

    print("KERNEL_OK")
</pallas_src>

<mosaic_0001>
module attributes {stable_mosaic.version = 11 : i64} {
  func.func @kernel(%arg0: i32, %arg1: i32, %arg2: memref<1x16x3x32xf32, #tpu.memory_space<vmem>>, %arg3: memref<8x32x32xf32, #tpu.memory_space<vmem>>, %arg4: memref<3x3x32xf32, #tpu.memory_space<vmem>>, %arg5: memref<1x3x3x32xf32, #tpu.memory_space<vmem>>) attributes {dimension_semantics = [#tpu.dimension_semantics<parallel>, #tpu.dimension_semantics<parallel>], iteration_bounds = array<i64: 2, 1>, scalar_prefetch = 0 : i64, scratch_operands = 0 : i64, tpu.core_type = #tpu.core_type<tc>, window_params = [{transform_indices = @transform_0, window_bounds = array<i64: 1, 16, 3, 32>}, {pipeline_mode = #tpu.pipeline_mode<synchronous>, transform_indices = @transform_1, window_bounds = array<i64: 8, 32, 32>}, {transform_indices = @transform_2, window_bounds = array<i64: 3, 3, 32>}, {transform_indices = @transform_3, window_bounds = array<i64: 1, 3, 3, 32>}]} {
    %c12_i32 = arith.constant 12 : i32
    %0 = arith.muli %arg1, %c12_i32 : i32
    %c0_i32 = arith.constant 0 : i32
    %1 = arith.addi %0, %c0_i32 : i32
    %c0 = arith.constant 0 : index
    %c0_0 = arith.constant 0 : index
    %c0_1 = arith.constant 0 : index
    %2 = vector.load %arg4[%c0, %c0_0, %c0_1] : memref<3x3x32xf32, #tpu.memory_space<vmem>>, vector<1x3x32xf32>
    %3 = vector.shape_cast %2 : vector<1x3x32xf32> to vector<3x32xf32>
    %c0_i32_2 = arith.constant 0 : i32
    %4 = arith.addi %1, %c0_i32_2 : i32
    %c0_3 = arith.constant 0 : index
    %5 = arith.index_cast %4 : i32 to index
    %c0_4 = arith.constant 0 : index
    %c0_5 = arith.constant 0 : index
    %6 = vector.load %arg2[%c0_3, %5, %c0_4, %c0_5] : memref<1x16x3x32xf32, #tpu.memory_space<vmem>>, vector<1x1x3x32xf32>
    %7 = vector.shape_cast %6 : vector<1x1x3x32xf32> to vector<3x32xf32>
    %c0_6 = arith.constant 0 : index
    %c0_7 = arith.constant 0 : index
    %c0_8 = arith.constant 0 : index
    %8 = vector.load %arg3[%c0_6, %c0_7, %c0_8] : memref<8x32x32xf32, #tpu.memory_space<vmem>>, vector<1x32x32xf32>
    %9 = vector.shape_cast %8 : vector<1x32x32xf32> to vector<32x32xf32>
    %cst = arith.constant dense<0.000000e+00> : vector<3x32xf32>
    %10 = tpu.matmul %7, %9, %cst {dimension_numbers = #tpu.dot_dimension_numbers<[1], [0], [0], [1], [0, 0, 1, 1], [], []>} : vector<3x32xf32>, vector<32x32xf32>, vector<3x32xf32> -> vector<3x32xf32>
    %11 = arith.addf %3, %10 : vector<3x32xf32>
    %c1_i32 = arith.constant 1 : i32
    %12 = arith.addi %1, %c1_i32 : i32
    %c0_9 = arith.constant 0 : index
    %13 = arith.index_cast %12 : i32 to index
    %c0_10 = arith.constant 0 : index
    %c0_11 = arith.constant 0 : index
    %14 = vector.load %arg2[%c0_9, %13, %c0_10, %c0_11] : memref<1x16x3x32xf32, #tpu.memory_space<vmem>>, vector<1x1x3x32xf32>
    %15 = vector.shape_cast %14 : vector<1x1x3x32xf32> to vector<3x32xf32>
    %c1 = arith.constant 1 : index
    %c0_12 = arith.constant 0 : index
    %c0_13 = arith.constant 0 : index
    %16 = vector.load %arg3[%c1, %c0_12, %c0_13] : memref<8x32x32xf32, #tpu.memory_space<vmem>>, vector<1x32x32xf32>
    %17 = vector.shape_cast %16 : vector<1x32x32xf32> to vector<32x32xf32>
    %cst_14 = arith.constant dense<0.000000e+00> : vector<3x32xf32>
    %18 = tpu.matmul %15, %17, %cst_14 {dimension_numbers = #tpu.dot_dimension_numbers<[1], [0], [0], [1], [0, 0, 1, 1], [], []>} : vector<3x32xf32>, vector<32x32xf32>, vector<3x32xf32> -> vector<3x32xf32>
    %19 = arith.addf %11, %18 : vector<3x32xf32>
    %c2_i32 = arith.constant 2 : i32
    %20 = arith.addi %1, %c2_i32 : i32
    %c0_15 = arith.constant 0 : index
    %21 = arith.index_cast %20 : i32 to index
    %c0_16 = arith.constant 0 : index
    %c0_17 = arith.constant 0 : index
    %22 = vector.load %arg2[%c0_15, %21, %c0_16, %c0_17] : memref<1x16x3x32xf32, #tpu.memory_space<vmem>>, vector<1x1x3x32xf32>
    %23 = vector.shape_cast %22 : vector<1x1x3x32xf32> to vector<3x32xf32>
    %c2 = arith.constant 2 : index
    %c0_18 = arith.constant 0 : index
    %c0_19 = arith.constant 0 : index
    %24 = vector.load %arg3[%c2, %c0_18, %c0_19] : memref<8x32x32xf32, #tpu.memory_space<vmem>>, vector<1x32x32xf32>
    %25 = vector.shape_cast %24 : vector<1x32x32xf32> to vector<32x32xf32>
    %cst_20 = arith.constant dense<0.000000e+00> : vector<3x32xf32>
    %26 = tpu.matmul %23, %25, %cst_20 {dimension_numbers = #tpu.dot_dimension_numbers<[1], [0], [0], [1], [0, 0, 1, 1], [], []>} : vector<3x32xf32>, vector<32x32xf32>, vector<3x32xf32> -> vector<3x32xf32>
    %27 = arith.addf %19, %26 : vector<3x32xf32>
    %c3_i32 = arith.constant 3 : i32
    %28 = arith.addi %1, %c3_i32 : i32
    %c0_21 = arith.constant 0 : index
    %29 = arith.index_cast %28 : i32 to index
    %c0_22 = arith.constant 0 : index
    %c0_23 = arith.constant 0 : index
    %30 = vector.load %arg2[%c0_21, %29, %c0_22, %c0_23] : memref<1x16x3x32xf32, #tpu.memory_space<vmem>>, vector<1x1x3x32xf32>
    %31 = vector.shape_cast %30 : vector<1x1x3x32xf32> to vector<3x32xf32>
    %c3 = arith.constant 3 : index
    %c0_24 = arith.constant 0 : index
    %c0_25 = arith.constant 0 : index
    %32 = vector.load %arg3[%c3, %c0_24, %c0_25] : memref<8x32x32xf32, #tpu.memory_space<vmem>>, vector<1x32x32xf32>
    %33 = vector.shape_cast %32 : vector<1x32x32xf32> to vector<32x32xf32>
    %cst_26 = arith.constant dense<0.000000e+00> : vector<3x32xf32>
    %34 = tpu.matmul %31, %33, %cst_26 {dimension_numbers = #tpu.dot_dimension_numbers<[1], [0], [0], [1], [0, 0, 1, 1], [], []>} : vector<3x32xf32>, vector<32x32xf32>, vector<3x32xf32> -> vector<3x32xf32>
    %35 = arith.addf %27, %34 : vector<3x32xf32>
    %c4_i32 = arith.constant 4 : i32
    %36 = arith.addi %1, %c4_i32 : i32
    %c0_27 = arith.constant 0 : index
    %37 = arith.index_cast %36 : i32 to index
    %c0_28 = arith.constant 0 : index
    %c0_29 = arith.constant 0 : index
    %38 = vector.load %arg2[%c0_27, %37, %c0_28, %c0_29] : memref<1x16x3x32xf32, #tpu.memory_space<vmem>>, vector<1x1x3x32xf32>
    %39 = vector.shape_cast %38 : vector<1x1x3x32xf32> to vector<3x32xf32>
    %c4 = arith.constant 4 : index
    %c0_30 = arith.constant 0 : index
    %c0_31 = arith.constant 0 : index
    %40 = vector.load %arg3[%c4, %c0_30, %c0_31] : memref<8x32x32xf32, #tpu.memory_space<vmem>>, vector<1x32x32xf32>
    %41 = vector.shape_cast %40 : vector<1x32x32xf32> to vector<32x32xf32>
    %cst_32 = arith.constant dense<0.000000e+00> : vector<3x32xf32>
    %42 = tpu.matmul %39, %41, %cst_32 {dimension_numbers = #tpu.dot_dimension_numbers<[1], [0], [0], [1], [0, 0, 1, 1], [], []>} : vector<3x32xf32>, vector<32x32xf32>, vector<3x32xf32> -> vector<3x32xf32>
    %43 = arith.addf %35, %42 : vector<3x32xf32>
    %c5_i32 = arith.constant 5 : i32
    %44 = arith.addi %1, %c5_i32 : i32
    %c0_33 = arith.constant 0 : index
    %45 = arith.index_cast %44 : i32 to index
    %c0_34 = arith.constant 0 : index
    %c0_35 = arith.constant 0 : index
    %46 = vector.load %arg2[%c0_33, %45, %c0_34, %c0_35] : memref<1x16x3x32xf32, #tpu.memory_space<vmem>>, vector<1x1x3x32xf32>
    %47 = vector.shape_cast %46 : vector<1x1x3x32xf32> to vector<3x32xf32>
    %c5 = arith.constant 5 : index
    %c0_36 = arith.constant 0 : index
    %c0_37 = arith.constant 0 : index
    %48 = vector.load %arg3[%c5, %c0_36, %c0_37] : memref<8x32x32xf32, #tpu.memory_space<vmem>>, vector<1x32x32xf32>
    %49 = vector.shape_cast %48 : vector<1x32x32xf32> to vector<32x32xf32>
    %cst_38 = arith.constant dense<0.000000e+00> : vector<3x32xf32>
    %50 = tpu.matmul %47, %49, %cst_38 {dimension_numbers = #tpu.dot_dimension_numbers<[1], [0], [0], [1], [0, 0, 1, 1], [], []>} : vector<3x32xf32>, vector<32x32xf32>, vector<3x32xf32> -> vector<3x32xf32>
    %51 = arith.addf %43, %50 : vector<3x32xf32>
    %c6_i32 = arith.constant 6 : i32
    %52 = arith.addi %1, %c6_i32 : i32
    %c0_39 = arith.constant 0 : index
    %53 = arith.index_cast %52 : i32 to index
    %c0_40 = arith.constant 0 : index
    %c0_41 = arith.constant 0 : index
    %54 = vector.load %arg2[%c0_39, %53, %c0_40, %c0_41] : memref<1x16x3x32xf32, #tpu.memory_space<vmem>>, vector<1x1x3x32xf32>
    %55 = vector.shape_cast %54 : vector<1x1x3x32xf32> to vector<3x32xf32>
    %c6 = arith.constant 6 : index
    %c0_42 = arith.constant 0 : index
    %c0_43 = arith.constant 0 : index
    %56 = vector.load %arg3[%c6, %c0_42, %c0_43] : memref<8x32x32xf32, #tpu.memory_space<vmem>>, vector<1x32x32xf32>
    %57 = vector.shape_cast %56 : vector<1x32x32xf32> to vector<32x32xf32>
    %cst_44 = arith.constant dense<0.000000e+00> : vector<3x32xf32>
    %58 = tpu.matmul %55, %57, %cst_44 {dimension_numbers = #tpu.dot_dimension_numbers<[1], [0], [0], [1], [0, 0, 1, 1], [], []>} : vector<3x32xf32>, vector<32x32xf32>, vector<3x32xf32> -> vector<3x32xf32>
    %59 = arith.addf %51, %58 : vector<3x32xf32>
    %c7_i32 = arith.constant 7 : i32
    %60 = arith.addi %1, %c7_i32 : i32
    %c0_45 = arith.constant 0 : index
    %61 = arith.index_cast %60 : i32 to index
    %c0_46 = arith.constant 0 : index
    %c0_47 = arith.constant 0 : index
    %62 = vector.load %arg2[%c0_45, %61, %c0_46, %c0_47] : memref<1x16x3x32xf32, #tpu.memory_space<vmem>>, vector<1x1x3x32xf32>
    %63 = vector.shape_cast %62 : vector<1x1x3x32xf32> to vector<3x32xf32>
    %c7 = arith.constant 7 : index
    %c0_48 = arith.constant 0 : index
    %c0_49 = arith.constant 0 : index
    %64 = vector.load %arg3[%c7, %c0_48, %c0_49] : memref<8x32x32xf32, #tpu.memory_space<vmem>>, vector<1x32x32xf32>
    %65 = vector.shape_cast %64 : vector<1x32x32xf32> to vector<32x32xf32>
    %cst_50 = arith.constant dense<0.000000e+00> : vector<3x32xf32>
    %66 = tpu.matmul %63, %65, %cst_50 {dimension_numbers = #tpu.dot_dimension_numbers<[1], [0], [0], [1], [0, 0, 1, 1], [], []>} : vector<3x32xf32>, vector<32x32xf32>, vector<3x32xf32> -> vector<3x32xf32>
    %67 = arith.addf %59, %66 : vector<3x32xf32>
    %c0_51 = arith.constant 0 : index
    %c0_52 = arith.constant 0 : index
    %c0_53 = arith.constant 0 : index
    %c0_54 = arith.constant 0 : index
    %68 = vector.load %arg5[%c0_51, %c0_52, %c0_53, %c0_54] : memref<1x3x3x32xf32, #tpu.memory_space<vmem>>, vector<1x1x3x32xf32>
    %69 = vector.shape_cast %68 : vector<1x1x3x32xf32> to vector<3x32xf32>
    %70 = vector.shape_cast %67 : vector<3x32xf32> to vector<1x1x3x32xf32>
    tpu.vector_store %arg5[%c0_51, %c0_52, %c0_53, %c0_54], %70 {strides = array<i32>} : memref<1x3x3x32xf32, #tpu.memory_space<vmem>>, vector<1x1x3x32xf32>,
    %c4_i32_55 = arith.constant 4 : i32
    %71 = arith.addi %0, %c4_i32_55 : i32
    %c1_56 = arith.constant 1 : index
    %c0_57 = arith.constant 0 : index
    %c0_58 = arith.constant 0 : index
    %72 = vector.load %arg4[%c1_56, %c0_57, %c0_58] : memref<3x3x32xf32, #tpu.memory_space<vmem>>, vector<1x3x32xf32>
    %73 = vector.shape_cast %72 : vector<1x3x32xf32> to vector<3x32xf32>
    %c0_i32_59 = arith.constant 0 : i32
    %74 = arith.addi %71, %c0_i32_59 : i32
    %c0_60 = arith.constant 0 : index
    %75 = arith.index_cast %74 : i32 to index
    %c0_61 = arith.constant 0 : index
    %c0_62 = arith.constant 0 : index
    %76 = vector.load %arg2[%c0_60, %75, %c0_61, %c0_62] : memref<1x16x3x32xf32, #tpu.memory_space<vmem>>, vector<1x1x3x32xf32>
    %77 = vector.shape_cast %76 : vector<1x1x3x32xf32> to vector<3x32xf32>
    %c0_63 = arith.constant 0 : index
    %c0_64 = arith.constant 0 : index
    %c0_65 = arith.constant 0 : index
    %78 = vector.load %arg3[%c0_63, %c0_64, %c0_65] : memref<8x32x32xf32, #tpu.memory_space<vmem>>, vector<1x32x32xf32>
    %79 = vector.shape_cast %78 : vector<1x32x32xf32> to vector<32x32xf32>
    %cst_66 = arith.constant dense<0.000000e+00> : vector<3x32xf32>
    %80 = tpu.matmul %77, %79, %cst_66 {dimension_numbers = #tpu.dot_dimension_numbers<[1], [0], [0], [1], [0, 0, 1, 1], [], []>} : vector<3x32xf32>, vector<32x32xf32>, vector<3x32xf32> -> vector<3x32xf32>
    %81 = arith.addf %73, %80 : vector<3x32xf32>
    %c1_i32_67 = arith.constant 1 : i32
    %82 = arith.addi %71, %c1_i32_67 : i32
    %c0_68 = arith.constant 0 : index
    %83 = arith.index_cast %82 : i32 to index
    %c0_69 = arith.constant 0 : index
    %c0_70 = arith.constant 0 : index
    %84 = vector.load %arg2[%c0_68, %83, %c0_69, %c0_70] : memref<1x16x3x32xf32, #tpu.memory_space<vmem>>, vector<1x1x3x32xf32>
    %85 = vector.shape_cast %84 : vector<1x1x3x32xf32> to vector<3x32xf32>
    %c1_71 = arith.constant 1 : index
    %c0_72 = arith.constant 0 : index
    %c0_73 = arith.constant 0 : index
    %86 = vector.load %arg3[%c1_71, %c0_72, %c0_73] : memref<8x32x32xf32, #tpu.memory_space<vmem>>, vector<1x32x32xf32>
    %87 = vector.shape_cast %86 : vector<1x32x32xf32> to vector<32x32xf32>
    %cst_74 = arith.constant dense<0.000000e+00> : vector<3x32xf32>
    %88 = tpu.matmul %85, %87, %cst_74 {dimension_numbers = #tpu.dot_dimension_numbers<[1], [0], [0], [1], [0, 0, 1, 1], [], []>} : vector<3x32xf32>, vector<32x32xf32>, vector<3x32xf32> -> vector<3x32xf32>
    %89 = arith.addf %81, %88 : vector<3x32xf32>
    %c2_i32_75 = arith.constant 2 : i32
    %90 = arith.addi %71, %c2_i32_75 : i32
    %c0_76 = arith.constant 0 : index
    %91 = arith.index_cast %90 : i32 to index
    %c0_77 = arith.constant 0 : index
    %c0_78 = arith.constant 0 : index
    %92 = vector.load %arg2[%c0_76, %91, %c0_77, %c0_78] : memref<1x16x3x32xf32, #tpu.memory_space<vmem>>, vector<1x1x3x32xf32>
    %93 = vector.shape_cast %92 : vector<1x1x3x32xf32> to vector<3x32xf32>
    %c2_79 = arith.constant 2 : index
    %c0_80 = arith.constant 0 : index
    %c0_81 = arith.constant 0 : index
    %94 = vector.load %arg3[%c2_79, %c0_80, %c0_81] : memref<8x32x32xf32, #tpu.memory_space<vmem>>, vector<1x32x32xf32>
    %95 = vector.shape_cast %94 : vector<1x32x32xf32> to vector<32x32xf32>
    %cst_82 = arith.constant dense<0.000000e+00> : vector<3x32xf32>
    %96 = tpu.matmul %93, %95, %cst_82 {dimension_numbers = #tpu.dot_dimension_numbers<[1], [0], [0], [1], [0, 0, 1, 1], [], []>} : vector<3x32xf32>, vector<32x32xf32>, vector<3x32xf32> -> vector<3x32xf32>
    %97 = arith.addf %89, %96 : vector<3x32xf32>
    %c3_i32_83 = arith.constant 3 : i32
    %98 = arith.addi %71, %c3_i32_83 : i32
    %c0_84 = arith.constant 0 : index
    %99 = arith.index_cast %98 : i32 to index
    %c0_85 = arith.constant 0 : index
    %c0_86 = arith.constant 0 : index
    %100 = vector.load %arg2[%c0_84, %99, %c0_85, %c0_86] : memref<1x16x3x32xf32, #tpu.memory_space<vmem>>, vector<1x1x3x32xf32>
    %101 = vector.shape_cast %100 : vector<1x1x3x32xf32> to vector<3x32xf32>
    %c3_87 = arith.constant 3 : index
    %c0_88 = arith.constant 0 : index
    %c0_89 = arith.constant 0 : index
    %102 = vector.load %arg3[%c3_87, %c0_88, %c0_89] : memref<8x32x32xf32, #tpu.memory_space<vmem>>, vector<1x32x32xf32>
    %103 = vector.shape_cast %102 : vector<1x32x32xf32> to vector<32x32xf32>
    %cst_90 = arith.constant dense<0.000000e+00> : vector<3x32xf32>
    %104 = tpu.matmul %101, %103, %cst_90 {dimension_numbers = #tpu.dot_dimension_numbers<[1], [0], [0], [1], [0, 0, 1, 1], [], []>} : vector<3x32xf32>, vector<32x32xf32>, vector<3x32xf32> -> vector<3x32xf32>
    %105 = arith.addf %97, %104 : vector<3x32xf32>
    %c4_i32_91 = arith.constant 4 : i32
    %106 = arith.addi %71, %c4_i32_91 : i32
    %c0_92 = arith.constant 0 : index
    %107 = arith.index_cast %106 : i32 to index
    %c0_93 = arith.constant 0 : index
    %c0_94 = arith.constant 0 : index
    %108 = vector.load %arg2[%c0_92, %107, %c0_93, %c0_94] : memref<1x16x3x32xf32, #tpu.memory_space<vmem>>, vector<1x1x3x32xf32>
    %109 = vector.shape_cast %108 : vector<1x1x3x32xf32> to vector<3x32xf32>
    %c4_95 = arith.constant 4 : index
    %c0_96 = arith.constant 0 : index
    %c0_97 = arith.constant 0 : index
    %110 = vector.load %arg3[%c4_95, %c0_96, %c0_97] : memref<8x32x32xf32, #tpu.memory_space<vmem>>, vector<1x32x32xf32>
    %111 = vector.shape_cast %110 : vector<1x32x32xf32> to vector<32x32xf32>
    %cst_98 = arith.constant dense<0.000000e+00> : vector<3x32xf32>
    %112 = tpu.matmul %109, %111, %cst_98 {dimension_numbers = #tpu.dot_dimension_numbers<[1], [0], [0], [1], [0, 0, 1, 1], [], []>} : vector<3x32xf32>, vector<32x32xf32>, vector<3x32xf32> -> vector<3x32xf32>
    %113 = arith.addf %105, %112 : vector<3x32xf32>
    %c5_i32_99 = arith.constant 5 : i32
    %114 = arith.addi %71, %c5_i32_99 : i32
    %c0_100 = arith.constant 0 : index
    %115 = arith.index_cast %114 : i32 to index
    %c0_101 = arith.constant 0 : index
    %c0_102 = arith.constant 0 : index
    %116 = vector.load %arg2[%c0_100, %115, %c0_101, %c0_102] : memref<1x16x3x32xf32, #tpu.memory_space<vmem>>, vector<1x1x3x32xf32>
    %117 = vector.shape_cast %116 : vector<1x1x3x32xf32> to vector<3x32xf32>
    %c5_103 = arith.constant 5 : index
    %c0_104 = arith.constant 0 : index
    %c0_105 = arith.constant 0 : index
    %118 = vector.load %arg3[%c5_103, %c0_104, %c0_105] : memref<8x32x32xf32, #tpu.memory_space<vmem>>, vector<1x32x32xf32>
    %119 = vector.shape_cast %118 : vector<1x32x32xf32> to vector<32x32xf32>
    %cst_106 = arith.constant dense<0.000000e+00> : vector<3x32xf32>
    %120 = tpu.matmul %117, %119, %cst_106 {dimension_numbers = #tpu.dot_dimension_numbers<[1], [0], [0], [1], [0, 0, 1, 1], [], []>} : vector<3x32xf32>, vector<32x32xf32>, vector<3x32xf32> -> vector<3x32xf32>
    %121 = arith.addf %113, %120 : vector<3x32xf32>
    %c6_i32_107 = arith.constant 6 : i32
    %122 = arith.addi %71, %c6_i32_107 : i32
    %c0_108 = arith.constant 0 : index
    %123 = arith.index_cast %122 : i32 to index
    %c0_109 = arith.constant 0 : index
    %c0_110 = arith.constant 0 : index
    %124 = vector.load %arg2[%c0_108, %123, %c0_109, %c0_110] : memref<1x16x3x32xf32, #tpu.memory_space<vmem>>, vector<1x1x3x32xf32>
    %125 = vector.shape_cast %124 : vector<1x1x3x32xf32> to vector<3x32xf32>
    %c6_111 = arith.constant 6 : index
    %c0_112 = arith.constant 0 : index
    %c0_113 = arith.constant 0 : index
    %126 = vector.load %arg3[%c6_111, %c0_112, %c0_113] : memref<8x32x32xf32, #tpu.memory_space<vmem>>, vector<1x32x32xf32>
    %127 = vector.shape_cast %126 : vector<1x32x32xf32> to vector<32x32xf32>
    %cst_114 = arith.constant dense<0.000000e+00> : vector<3x32xf32>
    %128 = tpu.matmul %125, %127, %cst_114 {dimension_numbers = #tpu.dot_dimension_numbers<[1], [0], [0], [1], [0, 0, 1, 1], [], []>} : vector<3x32xf32>, vector<32x32xf32>, vector<3x32xf32> -> vector<3x32xf32>
    %129 = arith.addf %121, %128 : vector<3x32xf32>
    %c7_i32_115 = arith.constant 7 : i32
    %130 = arith.addi %71, %c7_i32_115 : i32
    %c0_116 = arith.constant 0 : index
    %131 = arith.index_cast %130 : i32 to index
    %c0_117 = arith.constant 0 : index
    %c0_118 = arith.constant 0 : index
    %132 = vector.load %arg2[%c0_116, %131, %c0_117, %c0_118] : memref<1x16x3x32xf32, #tpu.memory_space<vmem>>, vector<1x1x3x32xf32>
    %133 = vector.shape_cast %132 : vector<1x1x3x32xf32> to vector<3x32xf32>
    %c7_119 = arith.constant 7 : index
    %c0_120 = arith.constant 0 : index
    %c0_121 = arith.constant 0 : index
    %134 = vector.load %arg3[%c7_119, %c0_120, %c0_121] : memref<8x32x32xf32, #tpu.memory_space<vmem>>, vector<1x32x32xf32>
    %135 = vector.shape_cast %134 : vector<1x32x32xf32> to vector<32x32xf32>
    %cst_122 = arith.constant dense<0.000000e+00> : vector<3x32xf32>
    %136 = tpu.matmul %133, %135, %cst_122 {dimension_numbers = #tpu.dot_dimension_numbers<[1], [0], [0], [1], [0, 0, 1, 1], [], []>} : vector<3x32xf32>, vector<32x32xf32>, vector<3x32xf32> -> vector<3x32xf32>
    %137 = arith.addf %129, %136 : vector<3x32xf32>
    %c0_123 = arith.constant 0 : index
    %c1_124 = arith.constant 1 : index
    %c0_125 = arith.constant 0 : index
    %c0_126 = arith.constant 0 : index
    %138 = vector.load %arg5[%c0_123, %c1_124, %c0_125, %c0_126] : memref<1x3x3x32xf32, #tpu.memory_space<vmem>>, vector<1x1x3x32xf32>
    %139 = vector.shape_cast %138 : vector<1x1x3x32xf32> to vector<3x32xf32>
    %140 = vector.shape_cast %137 : vector<3x32xf32> to vector<1x1x3x32xf32>
    tpu.vector_store %arg5[%c0_123, %c1_124, %c0_125, %c0_126], %140 {strides = array<i32>} : memref<1x3x3x32xf32, #tpu.memory_space<vmem>>, vector<1x1x3x32xf32>,
    %c8_i32 = arith.constant 8 : i32
    %141 = arith.addi %0, %c8_i32 : i32
    %c2_127 = arith.constant 2 : index
    %c0_128 = arith.constant 0 : index
    %c0_129 = arith.constant 0 : index
    %142 = vector.load %arg4[%c2_127, %c0_128, %c0_129] : memref<3x3x32xf32, #tpu.memory_space<vmem>>, vector<1x3x32xf32>
    %143 = vector.shape_cast %142 : vector<1x3x32xf32> to vector<3x32xf32>
    %c0_i32_130 = arith.constant 0 : i32
    %144 = arith.addi %141, %c0_i32_130 : i32
    %c0_131 = arith.constant 0 : index
    %145 = arith.index_cast %144 : i32 to index
    %c0_132 = arith.constant 0 : index
    %c0_133 = arith.constant 0 : index
    %146 = vector.load %arg2[%c0_131, %145, %c0_132, %c0_133] : memref<1x16x3x32xf32, #tpu.memory_space<vmem>>, vector<1x1x3x32xf32>
    %147 = vector.shape_cast %146 : vector<1x1x3x32xf32> to vector<3x32xf32>
    %c0_134 = arith.constant 0 : index
    %c0_135 = arith.constant 0 : index
    %c0_136 = arith.constant 0 : index
    %148 = vector.load %arg3[%c0_134, %c0_135, %c0_136] : memref<8x32x32xf32, #tpu.memory_space<vmem>>, vector<1x32x32xf32>
    %149 = vector.shape_cast %148 : vector<1x32x32xf32> to vector<32x32xf32>
    %cst_137 = arith.constant dense<0.000000e+00> : vector<3x32xf32>
    %150 = tpu.matmul %147, %149, %cst_137 {dimension_numbers = #tpu.dot_dimension_numbers<[1], [0], [0], [1], [0, 0, 1, 1], [], []>} : vector<3x32xf32>, vector<32x32xf32>, vector<3x32xf32> -> vector<3x32xf32>
    %151 = arith.addf %143, %150 : vector<3x32xf32>
    %c1_i32_138 = arith.constant 1 : i32
    %152 = arith.addi %141, %c1_i32_138 : i32
    %c0_139 = arith.constant 0 : index
    %153 = arith.index_cast %152 : i32 to index
    %c0_140 = arith.constant 0 : index
    %c0_141 = arith.constant 0 : index
    %154 = vector.load %arg2[%c0_139, %153, %c0_140, %c0_141] : memref<1x16x3x32xf32, #tpu.memory_space<vmem>>, vector<1x1x3x32xf32>
    %155 = vector.shape_cast %154 : vector<1x1x3x32xf32> to vector<3x32xf32>
    %c1_142 = arith.constant 1 : index
    %c0_143 = arith.constant 0 : index
    %c0_144 = arith.constant 0 : index
    %156 = vector.load %arg3[%c1_142, %c0_143, %c0_144] : memref<8x32x32xf32, #tpu.memory_space<vmem>>, vector<1x32x32xf32>
    %157 = vector.shape_cast %156 : vector<1x32x32xf32> to vector<32x32xf32>
    %cst_145 = arith.constant dense<0.000000e+00> : vector<3x32xf32>
    %158 = tpu.matmul %155, %157, %cst_145 {dimension_numbers = #tpu.dot_dimension_numbers<[1], [0], [0], [1], [0, 0, 1, 1], [], []>} : vector<3x32xf32>, vector<32x32xf32>, vector<3x32xf32> -> vector<3x32xf32>
    %159 = arith.addf %151, %158 : vector<3x32xf32>
    %c2_i32_146 = arith.constant 2 : i32
    %160 = arith.addi %141, %c2_i32_146 : i32
    %c0_147 = arith.constant 0 : index
    %161 = arith.index_cast %160 : i32 to index
    %c0_148 = arith.constant 0 : index
    %c0_149 = arith.constant 0 : index
    %162 = vector.load %arg2[%c0_147, %161, %c0_148, %c0_149] : memref<1x16x3x32xf32, #tpu.memory_space<vmem>>, vector<1x1x3x32xf32>
    %163 = vector.shape_cast %162 : vector<1x1x3x32xf32> to vector<3x32xf32>
    %c2_150 = arith.constant 2 : index
    %c0_151 = arith.constant 0 : index
    %c0_152 = arith.constant 0 : index
    %164 = vector.load %arg3[%c2_150, %c0_151, %c0_152] : memref<8x32x32xf32, #tpu.memory_space<vmem>>, vector<1x32x32xf32>
    %165 = vector.shape_cast %164 : vector<1x32x32xf32> to vector<32x32xf32>
    %cst_153 = arith.constant dense<0.000000e+00> : vector<3x32xf32>
    %166 = tpu.matmul %163, %165, %cst_153 {dimension_numbers = #tpu.dot_dimension_numbers<[1], [0], [0], [1], [0, 0, 1, 1], [], []>} : vector<3x32xf32>, vector<32x32xf32>, vector<3x32xf32> -> vector<3x32xf32>
    %167 = arith.addf %159, %166 : vector<3x32xf32>
    %c3_i32_154 = arith.constant 3 : i32
    %168 = arith.addi %141, %c3_i32_154 : i32
    %c0_155 = arith.constant 0 : index
    %169 = arith.index_cast %168 : i32 to index
    %c0_156 = arith.constant 0 : index
    %c0_157 = arith.constant 0 : index
    %170 = vector.load %arg2[%c0_155, %169, %c0_156, %c0_157] : memref<1x16x3x32xf32, #tpu.memory_space<vmem>>, vector<1x1x3x32xf32>
    %171 = vector.shape_cast %170 : vector<1x1x3x32xf32> to vector<3x32xf32>
    %c3_158 = arith.constant 3 : index
    %c0_159 = arith.constant 0 : index
    %c0_160 = arith.constant 0 : index
    %172 = vector.load %arg3[%c3_158, %c0_159, %c0_160] : memref<8x32x32xf32, #tpu.memory_space<vmem>>, vector<1x32x32xf32>
    %173 = vector.shape_cast %172 : vector<1x32x32xf32> to vector<32x32xf32>
    %cst_161 = arith.constant dense<0.000000e+00> : vector<3x32xf32>
    %174 = tpu.matmul %171, %173, %cst_161 {dimension_numbers = #tpu.dot_dimension_numbers<[1], [0], [0], [1], [0, 0, 1, 1], [], []>} : vector<3x32xf32>, vector<32x32xf32>, vector<3x32xf32> -> vector<3x32xf32>
    %175 = arith.addf %167, %174 : vector<3x32xf32>
    %c4_i32_162 = arith.constant 4 : i32
    %176 = arith.addi %141, %c4_i32_162 : i32
    %c0_163 = arith.constant 0 : index
    %177 = arith.index_cast %176 : i32 to index
    %c0_164 = arith.constant 0 : index
    %c0_165 = arith.constant 0 : index
    %178 = vector.load %arg2[%c0_163, %177, %c0_164, %c0_165] : memref<1x16x3x32xf32, #tpu.memory_space<vmem>>, vector<1x1x3x32xf32>
    %179 = vector.shape_cast %178 : vector<1x1x3x32xf32> to vector<3x32xf32>
    %c4_166 = arith.constant 4 : index
    %c0_167 = arith.constant 0 : index
    %c0_168 = arith.constant 0 : index
    %180 = vector.load %arg3[%c4_166, %c0_167, %c0_168] : memref<8x32x32xf32, #tpu.memory_space<vmem>>, vector<1x32x32xf32>
    %181 = vector.shape_cast %180 : vector<1x32x32xf32> to vector<32x32xf32>
    %cst_169 = arith.constant dense<0.000000e+00> : vector<3x32xf32>
    %182 = tpu.matmul %179, %181, %cst_169 {dimension_numbers = #tpu.dot_dimension_numbers<[1], [0], [0], [1], [0, 0, 1, 1], [], []>} : vector<3x32xf32>, vector<32x32xf32>, vector<3x32xf32> -> vector<3x32xf32>
    %183 = arith.addf %175, %182 : vector<3x32xf32>
    %c5_i32_170 = arith.constant 5 : i32
    %184 = arith.addi %141, %c5_i32_170 : i32
    %c0_171 = arith.constant 0 : index
    %185 = arith.index_cast %184 : i32 to index
    %c0_172 = arith.constant 0 : index
    %c0_173 = arith.constant 0 : index
    %186 = vector.load %arg2[%c0_171, %185, %c0_172, %c0_173] : memref<1x16x3x32xf32, #tpu.memory_space<vmem>>, vector<1x1x3x32xf32>
    %187 = vector.shape_cast %186 : vector<1x1x3x32xf32> to vector<3x32xf32>
    %c5_174 = arith.constant 5 : index
    %c0_175 = arith.constant 0 : index
    %c0_176 = arith.constant 0 : index
    %188 = vector.load %arg3[%c5_174, %c0_175, %c0_176] : memref<8x32x32xf32, #tpu.memory_space<vmem>>, vector<1x32x32xf32>
    %189 = vector.shape_cast %188 : vector<1x32x32xf32> to vector<32x32xf32>
    %cst_177 = arith.constant dense<0.000000e+00> : vector<3x32xf32>
    %190 = tpu.matmul %187, %189, %cst_177 {dimension_numbers = #tpu.dot_dimension_numbers<[1], [0], [0], [1], [0, 0, 1, 1], [], []>} : vector<3x32xf32>, vector<32x32xf32>, vector<3x32xf32> -> vector<3x32xf32>
    %191 = arith.addf %183, %190 : vector<3x32xf32>
    %c6_i32_178 = arith.constant 6 : i32
    %192 = arith.addi %141, %c6_i32_178 : i32
    %c0_179 = arith.constant 0 : index
    %193 = arith.index_cast %192 : i32 to index
    %c0_180 = arith.constant 0 : index
    %c0_181 = arith.constant 0 : index
    %194 = vector.load %arg2[%c0_179, %193, %c0_180, %c0_181] : memref<1x16x3x32xf32, #tpu.memory_space<vmem>>, vector<1x1x3x32xf32>
    %195 = vector.shape_cast %194 : vector<1x1x3x32xf32> to vector<3x32xf32>
    %c6_182 = arith.constant 6 : index
    %c0_183 = arith.constant 0 : index
    %c0_184 = arith.constant 0 : index
    %196 = vector.load %arg3[%c6_182, %c0_183, %c0_184] : memref<8x32x32xf32, #tpu.memory_space<vmem>>, vector<1x32x32xf32>
    %197 = vector.shape_cast %196 : vector<1x32x32xf32> to vector<32x32xf32>
    %cst_185 = arith.constant dense<0.000000e+00> : vector<3x32xf32>
    %198 = tpu.matmul %195, %197, %cst_185 {dimension_numbers = #tpu.dot_dimension_numbers<[1], [0], [0], [1], [0, 0, 1, 1], [], []>} : vector<3x32xf32>, vector<32x32xf32>, vector<3x32xf32> -> vector<3x32xf32>
    %199 = arith.addf %191, %198 : vector<3x32xf32>
    %c7_i32_186 = arith.constant 7 : i32
    %200 = arith.addi %141, %c7_i32_186 : i32
    %c0_187 = arith.constant 0 : index
    %201 = arith.index_cast %200 : i32 to index
    %c0_188 = arith.constant 0 : index
    %c0_189 = arith.constant 0 : index
    %202 = vector.load %arg2[%c0_187, %201, %c0_188, %c0_189] : memref<1x16x3x32xf32, #tpu.memory_space<vmem>>, vector<1x1x3x32xf32>
    %203 = vector.shape_cast %202 : vector<1x1x3x32xf32> to vector<3x32xf32>
    %c7_190 = arith.constant 7 : index
    %c0_191 = arith.constant 0 : index
    %c0_192 = arith.constant 0 : index
    %204 = vector.load %arg3[%c7_190, %c0_191, %c0_192] : memref<8x32x32xf32, #tpu.memory_space<vmem>>, vector<1x32x32xf32>
    %205 = vector.shape_cast %204 : vector<1x32x32xf32> to vector<32x32xf32>
    %cst_193 = arith.constant dense<0.000000e+00> : vector<3x32xf32>
    %206 = tpu.matmul %203, %205, %cst_193 {dimension_numbers = #tpu.dot_dimension_numbers<[1], [0], [0], [1], [0, 0, 1, 1], [], []>} : vector<3x32xf32>, vector<32x32xf32>, vector<3x32xf32> -> vector<3x32xf32>
    %207 = arith.addf %199, %206 : vector<3x32xf32>
    %c0_194 = arith.constant 0 : index
    %c2_195 = arith.constant 2 : index
    %c0_196 = arith.constant 0 : index
    %c0_197 = arith.constant 0 : index
    %208 = vector.load %arg5[%c0_194, %c2_195, %c0_196, %c0_197] : memref<1x3x3x32xf32, #tpu.memory_space<vmem>>, vector<1x1x3x32xf32>
    %209 = vector.shape_cast %208 : vector<1x1x3x32xf32> to vector<3x32xf32>
    %210 = vector.shape_cast %207 : vector<3x32xf32> to vector<1x1x3x32xf32>
    tpu.vector_store %arg5[%c0_194, %c2_195, %c0_196, %c0_197], %210 {strides = array<i32>} : memref<1x3x3x32xf32, #tpu.memory_space<vmem>>, vector<1x1x3x32xf32>,
    return
  }
  func.func @transform_0(%arg0: i32, %arg1: i32) -> (i32, i32, i32, i32) {
    %c0_i32 = arith.constant 0 : i32
    %c0_i32_0 = arith.constant 0 : i32
    %c0_i32_1 = arith.constant 0 : i32
    %c0_i32_2 = arith.constant 0 : i32
    return %arg0, %c0_i32, %c0_i32_0, %c0_i32_1 : i32, i32, i32, i32
  }
  func.func @transform_1(%arg0: i32, %arg1: i32) -> (i32, i32, i32) {
    %c0_i32 = arith.constant 0 : i32
    %c0_i32_0 = arith.constant 0 : i32
    %c0_i32_1 = arith.constant 0 : i32
    %c0_i32_2 = arith.constant 0 : i32
    return %c0_i32, %c0_i32_0, %c0_i32_1 : i32, i32, i32
  }
  func.func @transform_2(%arg0: i32, %arg1: i32) -> (i32, i32, i32) {
    %c0_i32 = arith.constant 0 : i32
    %c0_i32_0 = arith.constant 0 : i32
    %c0_i32_1 = arith.constant 0 : i32
    return %arg1, %c0_i32, %c0_i32_0 : i32, i32, i32
  }
  func.func @transform_3(%arg0: i32, %arg1: i32) -> (i32, i32, i32, i32) {
    %c0_i32 = arith.constant 0 : i32
    %c0_i32_0 = arith.constant 0 : i32
    %c0_i32_1 = arith.constant 0 : i32
    return %arg0, %arg1, %c0_i32, %c0_i32_0 : i32, i32, i32, i32
  }
}

</mosaic_0001>

<llo_original>
// kernel: a_call__.1
$region0: #{a_call__.1}
  #allocation0 [shape = 'u32[]', space=smem, size = 0x4, offset = 0x4, fixed_abs, tag = 'smem constant byte address 0x4 - core index']
  #allocation1 [shape = 'u32[144,128]{1,0:T(1,128)}', space=vmem, size = 0x12000, scoped, tag = 'internal scratch']
  %s0 = inlined_call_operand.vmem [shape: f32[2,16,3,32], index: 0, kind: input, shape index: {}]
  %s1 = inlined_call_operand.vmem [shape: f32[8,32,32], index: 1, kind: input, shape index: {}]
  %s2 = inlined_call_operand.vmem [shape: f32[3,3,32], index: 2, kind: input, shape index: {}]
  %s3 = inlined_call_operand.vmem [shape: f32[2,3,3,32], index: 3, kind: output, shape index: {}]
  %s4 = sld [smem:[#allocation0]]
  $region45: #{a_call__.1} parent=0
    _
  %s6 = ssub.s32 1, %s4
  %s7 = scalar_select 0, %s6, %s4
  loop: start=0, step=1, limit=4
  $region2: #{a_call__.1} parent=0 // loop_pre_header
    _
  $region3: #{a_call__.1} parent=0 // loop_header
    %s9 = sphi 0, %s13
    %p10 = scmp.ge.s32.totalorder %s9, 4
    %s16 = sphi 0, %s28
    %s17 = sphi 0, %s24
    %s18 = sphi 0, %s16
    %s19 = sphi 0, %s17
    %s20 = sphi 0, %s18
    %s21 = sphi 0, %s19
    %s31 = sphi 0, %s33
    %s34 = sphi 0, %s31
    %s35 = sphi 0, %s34
    %s51 = sphi 0, %s35
    %s55 = sphi 0, %s55
    %s57 = sphi 0, %s55
    %s58 = sphi 0, %s57
    %s72 = sphi 0, %s58
    %s78 = sphi 0, %s80
    %s81 = sphi 0, %s78
    %s82 = sphi 0, %s81
    %s98 = sphi 0, %s82
    %s106 = sphi 0, %s108
    %s109 = sphi 0, %s106
    %s110 = sphi 0, %s109
    %s126 = sphi 0, %s110
  $region4: #{a_call__.1} parent=0 // loop_header_branch
    %12 = sbr.rel (%p10) target = $region8
  $region5: #{a_call__.1} parent=0 // loop_body
    %s14 = ssub.s32 %s9, 1
    %s15 = ssub.s32 %s9, 2
    %s22 = sadd.s32 1, %s17
    %p23 = scmp.ge.s32.totalorder %s22, 1
    %s24 = scalar_select %p23, 0, %s22
    %s25 = sadd.s32 1, %s16
    %s26 = scalar_select %p23, %s25, %s16
    %p27 = scmp.ge.s32.totalorder %s26, 2
    %s28 = scalar_select %p27, 0, %s26
    %s29 = ssub.s32 %s16, %s28
    %p30 = scmp.eq.s32.totalorder %s29, 0
    %s32 = sadd.s32 %s31, 1
    %s33 = scalar_select %p30, %s31, %s32
    %p36 = pneg %p30
    %p37 = scmp.eq.s32.totalorder %s9, 1
    %p38 = por %p36, %p37
    %p39 = scmp.ne.s32.totalorder %s31, %s34
    %p40 = scmp.eq.s32.totalorder %s9, 0
    %p41 = por %p39, %p40
    %p42 = scmp.ne.s32.totalorder %s31, %s34
    %p43 = scmp.eq.s32.totalorder %s14, 1
    %p44 = por %p42, %p43
    %p45 = scmp.ne.s32.totalorder %s34, %s35
    %p46 = scmp.eq.s32.totalorder %s14, 0
    %p47 = por %p45, %p46
    %p48 = scmp.ne.s32.totalorder %s34, %s35
    %p49 = scmp.eq.s32.totalorder %s15, 1
    %p50 = por %p48, %p49
    %p52 = scmp.ne.s32.totalorder %s35, %s51
    %p53 = scmp.eq.s32.totalorder %s15, 0
    %p54 = por %p52, %p53
    %s56 = sadd.s32 %s55, 1
    %p59 = scmp.eq.s32.totalorder %s9, 1
    %p60 = scmp.ne.s32.totalorder %s55, %s57
    %p61 = scmp.eq.s32.totalorder %s9, 0
    %p62 = por %p60, %p61
    %p63 = scmp.ne.s32.totalorder %s55, %s57
    %p64 = scmp.eq.s32.totalorder %s14, 1
    %p65 = por %p63, %p64
    %p66 = scmp.ne.s32.totalorder %s57, %s58
    %p67 = scmp.eq.s32.totalorder %s14, 0
    %p68 = por %p66, %p67
    %p69 = scmp.ne.s32.totalorder %s57, %s58
    %p70 = scmp.eq.s32.totalorder %s15, 1
    %p71 = por %p69, %p70
    %p73 = scmp.ne.s32.totalorder %s58, %s72
    %p74 = scmp.eq.s32.totalorder %s15, 0
    %p75 = por %p73, %p74
    %s76 = ssub.s32 %s17, %s24
    %p77 = scmp.eq.s32.totalorder %s76, 0
    %s79 = sadd.s32 %s78, 1
    %s80 = scalar_select %p77, %s78, %s79
    %p83 = pneg %p77
    %p84 = scmp.eq.s32.totalorder %s9, 1
    %p85 = por %p83, %p84
    %p86 = scmp.ne.s32.totalorder %s78, %s81
    %p87 = scmp.eq.s32.totalorder %s9, 0
    %p88 = por %p86, %p87
    %p89 = scmp.ne.s32.totalorder %s78, %s81
    %p90 = scmp.eq.s32.totalorder %s14, 1
    %p91 = por %p89, %p90
    %p92 = scmp.ne.s32.totalorder %s81, %s82
    %p93 = scmp.eq.s32.totalorder %s14, 0
    %p94 = por %p92, %p93
    %p95 = scmp.ne.s32.totalorder %s81, %s82
    %p96 = scmp.eq.s32.totalorder %s15, 1
    %p97 = por %p95, %p96
    %p99 = scmp.ne.s32.totalorder %s82, %s98
    %p100 = scmp.eq.s32.totalorder %s15, 0
    %p101 = por %p99, %p100
    %s102 = ssub.s32 %s16, %s28
    %s103 = ssub.s32 %s17, %s24
    %s104 = sor.u32 %s102, %s103
    %p105 = scmp.eq.s32.totalorder %s104, 0
    %s107 = sadd.s32 %s106, 1
    %s108 = scalar_select %p105, %s106, %s107
    %p111 = pneg %p105
    %p112 = scmp.eq.s32.totalorder %s9, 1
    %p113 = por %p111, %p112
    %p114 = scmp.ne.s32.totalorder %s106, %s109
    %p115 = scmp.eq.s32.totalorder %s9, 0
    %p116 = por %p114, %p115
    %p117 = scmp.ne.s32.totalorder %s106, %s109
    %p118 = scmp.eq.s32.totalorder %s14, 1
    %p119 = por %p117, %p118
    %p120 = scmp.ne.s32.totalorder %s109, %s110
    %p121 = scmp.eq.s32.totalorder %s14, 0
    %p122 = por %p120, %p121
    %p123 = scmp.ne.s32.totalorder %s109, %s110
    %p124 = scmp.eq.s32.totalorder %s15, 1
    %p125 = por %p123, %p124
    %p127 = scmp.ne.s32.totalorder %s110, %s126
    %p128 = scmp.eq.s32.totalorder %s15, 0
    %p129 = por %p127, %p128
    %p130 = scmp.le.s32.totalorder 1, %s9
    %p131 = scmp.lt.s32.totalorder %s9, 3
    %p132 = pnand %p130, %p131
    %p133 = pneg %p132
    // Predicated region
    $region9: #{a_call__.1} parent=5 // pred_check
      _
    $region10: #{a_call__.1} parent=5 // pred_check_branch
      %135 = sbr.rel (%p132) target = $region12
    $region11: #{a_call__.1} parent=5 // pred_region
      %s136 = ssub.s32 %s9, 1
      // Predicated region
      $region13: #{a_call__.1} parent=11 // pred_check
        %p137 = pneg %p68
      $region14: #{a_call__.1} parent=11 // pred_check_branch
        %139 = sbr.rel (%p137) target = $region16
      $region15: #{a_call__.1} parent=11 // pred_region
        _
      $region16: #{a_call__.1} parent=11 // pred_fallthru
        _
      // Predicated region
      $region17: #{a_call__.1} parent=11 // pred_check
        %p140 = pneg %p94
      $region18: #{a_call__.1} parent=11 // pred_check_branch
        %142 = sbr.rel (%p140) target = $region20
      $region19: #{a_call__.1} parent=11 // pred_region
        %s143 = smul.u32 3, %s19
        %p144 = scmp.lt.s32.totalorder %s143, 2
        %s145 = scalar_select %p144, %s143, 2
        %s146 = smul.addr %s145, 4
        %s147 = scalar_lea.vmem %s2, %s146
        %s148 = smul.u32 3, %s19
      $region20: #{a_call__.1} parent=11 // pred_fallthru
        _
    $region12: #{a_call__.1} parent=5 // pred_fallthru
      _
    %p149 = scmp.lt.s32.totalorder %s9, 2
    // Predicated region
    $region21: #{a_call__.1} parent=5 // pred_check
      %p150 = pneg %p149
    $region22: #{a_call__.1} parent=5 // pred_check_branch
      %152 = sbr.rel (%p150) target = $region24
    $region23: #{a_call__.1} parent=5 // pred_region
      // Predicated region
      $region25: #{a_call__.1} parent=23 // pred_check
        %p153 = pneg %p41
      $region26: #{a_call__.1} parent=23 // pred_check_branch
        %155 = sbr.rel (%p153) target = $region28
      $region27: #{a_call__.1} parent=23 // pred_region
        %p156 = scmp.lt.s32.totalorder %s16, 1
        %s157 = scalar_select %p156, %s16, 1
        %s158 = smul.addr %s157, 16
        %s159 = smul.addr %s158, 4
        %s160 = scalar_lea.vmem %s0, %s159
      $region28: #{a_call__.1} parent=23 // pred_fallthru
        _
    $region24: #{a_call__.1} parent=5 // pred_fallthru
      _
    %p161 = scmp.le.s32.totalorder 1, %s9
    %p162 = scmp.lt.s32.totalorder %s9, 3
    %p163 = pnand %p161, %p162
    %p164 = pneg %p163
    // Predicated region
    $region29: #{a_call__.1} parent=5 // pred_check
      _
    $region30: #{a_call__.1} parent=5 // pred_check_branch
      %166 = sbr.rel (%p163) target = $region32
    $region31: #{a_call__.1} parent=5 // pred_region
      %s167 = ssub.s32 %s9, 1
      %p168 = scmp.lt.s32.totalorder %s18, 1
      %s169 = scalar_select %p168, %s18, 1
      %s170 = smul.addr %s169, 16
      %s171 = smul.addr %s170, 4
      %s172 = scalar_lea.vmem %s0, %s171
      %p173 = pneg %p47
      %p174 = pneg %p44
      %p175 = pneg %p68
      %p176 = pneg %p65
      %s177 = smul.u32 3, %s19
      %p178 = scmp.lt.s32.totalorder %s177, 2
      %s179 = scalar_select %p178, %s177, 2
      %s180 = smul.addr %s179, 4
      %s181 = scalar_lea.vmem %s2, %s180
      %p182 = pneg %p94
      %p183 = pneg %p91
      %p184 = pneg %p122
      %p185 = pneg %p119
      %s186 = smul.u32 3, %s19
      %p187 = scmp.lt.s32.totalorder %s18, 1
      %s188 = scalar_select %p187, %s18, 1
      %p189 = scmp.lt.s32.totalorder %s186, 2
      %s190 = scalar_select %p189, %s186, 2
      %s191 = smul.addr %s188, 3
      %s192 = sadd.s32 %s190, %s191
      %s193 = smul.addr %s192, 4
      %s194 = scalar_lea.vmem %s3, %s193
      %p195 = scmp.lt.s32.totalorder %s18, 1
      %s196 = scalar_select %p195, %s18, 1
      %s197 = smul.addr %s196, 16
      %s198 = smul.addr %s197, 4
      %s199 = scalar_lea.vmem %s0, %s198
      %s200 = smul.u32 3, %s19
      %p201 = scmp.lt.s32.totalorder %s200, 2
      %s202 = scalar_select %p201, %s200, 2
      %s203 = smul.addr %s202, 4
      %s204 = scalar_lea.vmem %s2, %s203
      %s205 = smul.u32 3, %s19
      %s206 = smul.u32 3, %s19
      %p207 = scmp.lt.s32.totalorder %s18, 1
      %s208 = scalar_select %p207, %s18, 1
      %p209 = scmp.lt.s32.totalorder %s206, 2
      %s210 = scalar_select %p209, %s206, 2
      %s211 = smul.addr %s208, 3
      %s212 = sadd.s32 %s210, %s211
      %s213 = smul.addr %s212, 4
      %s214 = scalar_lea.vmem %s3, %s213
      %s215 = smul.u32 3, %s19
      %s216 = smul.u32 %s19, 12
      %v217 = vld [vmem:[%s204] sm:$0x7]
      %s218 = smul.u32 %s216, 4
      %s219 = scalar_lea.vmem %s199, %s218
      %v220 = vld [vmem:[%s219] sm:$0x7]
      %v221 = vld [vmem:[%s1] sm:$0xff]
      %v222 = vld [vmem:[%s1 + $0x8] sm:$0xff]
      %v223 = vld [vmem:[%s1 + $0x10] sm:$0xff]
      %v224 = vld [vmem:[%s1 + $0x18] sm:$0xff]
      %vm225 = vcmask 261120
      %v227 = vsel %vm225, %v220, 0
      %229 = vmatprep.subr.mxu0 0.0
      %230 = vmatpush1.msra.mxu0 %v221
      %231 = vmatprep.subr.mxu0 0.0
      %232 = vmatpush1.msra.mxu0 %v222
      %233 = vmatprep.subr.mxu0 0.0
      %234 = vmatpush1.msra.mxu0 %v223
      %235 = vmatprep.subr.mxu0 0.0
      %236 = vmatpush1.msra.mxu0 %v224
      %237 = vmatprep.subr.mxu0 0.0
      %238 = vmatpush1.msra.mxu0 0.0
      %239 = vmatprep.subr.mxu0 0.0
      %240 = vmatpush1.msra.mxu0 0.0
      %241 = vmatprep.subr.mxu0 0.0
      %242 = vmatpush1.msra.mxu0 0.0
      %243 = vmatprep.subr.mxu0 0.0
      %244 = vmatpush1.msra.mxu0 0.0
      %245 = vmatprep.subr.mxu0 0.0
      %246 = vmatpush1.msra.mxu0 0.0
      %247 = vmatprep.subr.mxu0 0.0
      %248 = vmatpush1.msra.mxu0 0.0
      %249 = vmatprep.subr.mxu0 0.0
      %250 = vmatpush1.msra.mxu0 0.0
      %251 = vmatprep.subr.mxu0 0.0
      %252 = vmatpush1.msra.mxu0 0.0
      %253 = vmatprep.subr.mxu0 0.0
      %254 = vmatpush1.msra.mxu0 0.0
      %255 = vmatprep.subr.mxu0 0.0
      %256 = vmatpush1.msra.mxu0 0.0
      %257 = vmatprep.subr.mxu0 0.0
      %258 = vmatpush1.msra.mxu0 0.0
      %259 = vmatprep.subr.mxu0 0.0
      %260 = vmatpush1.msra.mxu0 0.0
      %261 = vmatprep.subr.mxu0 0.0
      %262 = vmatpush1.msra.mxu0 0.0
      %263 = vmatprep.subr.mxu0 0.0
      %264 = vmatpush1.msra.mxu0 0.0
      %265 = vmatprep.subr.mxu0 0.0
      %266 = vmatpush1.msra.mxu0 0.0
      %267 = vmatprep.subr.mxu0 0.0
      %268 = vmatpush1.msra.mxu0 0.0
      %269 = vmatprep.subr.mxu0 0.0
      %270 = vmatpush1.msra.mxu0 0.0
      %271 = vmatprep.subr.mxu0 0.0
      %272 = vmatpush1.msra.mxu0 0.0
      %273 = vmatprep.subr.mxu0 0.0
      %274 = vmatpush1.msra.mxu0 0.0
      %275 = vmatprep.subr.mxu0 0.0
      %276 = vmatpush1.msra.mxu0 0.0
      %277 = vmatprep.subr.mxu0 0.0
      %278 = vmatpush1.msra.mxu0 0.0
      %279 = vmatprep.subr.mxu0 0.0
      %280 = vmatpush1.msra.mxu0 0.0
      %281 = vmatprep.subr.mxu0 0.0
      %282 = vmatpush1.msra.mxu0 0.0
      %283 = vmatprep.subr.mxu0 0.0
      %284 = vmatpush1.msra.mxu0 0.0
      %285 = vmatprep.subr.mxu0 0.0
      %286 = vmatpush1.msra.mxu0 0.0
      %287 = vmatprep.subr.mxu0 0.0
      %288 = vmatpush1.msra.mxu0 0.0
      %289 = vmatprep.subr.mxu0 0.0
      %290 = vmatpush1.msra.mxu0 0.0
      %291 = vmatprep.subr.mxu0 0.0
      %292 = vmatpush1.msra.mxu0 0.0
      %293 = vmatprep.mubr.f32.mxu0 0.0
      %294 = vmatmul.mubr.f32.gmra.mrb[0].mxu0 %v227
      %v295 = vpop.f32.mrb[0].mxu0
      %v296 = vadd.f32 0.0, %v295
      %v297 = vpop.f32.mrb[0].mxu0
      %298 = vdwg.mxu0
      %v299 = vadd.f32 %v217, %v296
      %s300 = sadd.s32 %s216, 1
      %s301 = smul.u32 %s300, 4
      %s302 = scalar_lea.vmem %s199, %s301
      %v303 = vld [vmem:[%s302] sm:$0x7]
      %s304 = scalar_lea.vmem %s1, 32
      %v305 = vld [vmem:[%s304] sm:$0xff]
      %v306 = vld [vmem:[%s304 + $0x8] sm:$0xff]
      %v307 = vld [vmem:[%s304 + $0x10] sm:$0xff]
      %v308 = vld [vmem:[%s304 + $0x18] sm:$0xff]
      %v310 = vsel %vm225, %v303, 0
      %312 = vmatprep.subr.mxu0 0.0
      %313 = vmatpush1.msra.mxu0 %v305
      %314 = vmatprep.subr.mxu0 0.0
      %315 = vmatpush1.msra.mxu0 %v306
      %316 = vmatprep.subr.mxu0 0.0
      %317 = vmatpush1.msra.mxu0 %v307
      %318 = vmatprep.subr.mxu0 0.0
      %319 = vmatpush1.msra.mxu0 %v308
      %320 = vmatprep.subr.mxu0 0.0
      %321 = vmatpush1.msra.mxu0 0.0
      %322 = vmatprep.subr.mxu0 0.0
      %323 = vmatpush1.msra.mxu0 0.0
      %324 = vmatprep.subr.mxu0 0.0
      %325 = vmatpush1.msra.mxu0 0.0
      %326 = vmatprep.subr.mxu0 0.0
      %327 = vmatpush1.msra.mxu0 0.0
      %328 = vmatprep.subr.mxu0 0.0
      %329 = vmatpush1.msra.mxu0 0.0
      %330 = vmatprep.subr.mxu0 0.0
      %331 = vmatpush1.msra.mxu0 0.0
      %332 = vmatprep.subr.mxu0 0.0
      %333 = vmatpush1.msra.mxu0 0.0
      %334 = vmatprep.subr.mxu0 0.0
      %335 = vmatpush1.msra.mxu0 0.0
      %336 = vmatprep.subr.mxu0 0.0
      %337 = vmatpush1.msra.mxu0 0.0
      %338 = vmatprep.subr.mxu0 0.0
      %339 = vmatpush1.msra.mxu0 0.0
      %340 = vmatprep.subr.mxu0 0.0
      %341 = vmatpush1.msra.mxu0 0.0
      %342 = vmatprep.subr.mxu0 0.0
      %343 = vmatpush1.msra.mxu0 0.0
      %344 = vmatprep.subr.mxu0 0.0
      %345 = vmatpush1.msra.mxu0 0.0
      %346 = vmatprep.subr.mxu0 0.0
      %347 = vmatpush1.msra.mxu0 0.0
      %348 = vmatprep.subr.mxu0 0.0
      %349 = vmatpush1.msra.mxu0 0.0
      %350 = vmatprep.subr.mxu0 0.0
      %351 = vmatpush1.msra.mxu0 0.0
      %352 = vmatprep.subr.mxu0 0.0
      %353 = vmatpush1.msra.mxu0 0.0
      %354 = vmatprep.subr.mxu0 0.0
      %355 = vmatpush1.msra.mxu0 0.0
      %356 = vmatprep.subr.mxu0 0.0
      %357 = vmatpush1.msra.mxu0 0.0
      %358 = vmatprep.subr.mxu0 0.0
      %359 = vmatpush1.msra.mxu0 0.0
      %360 = vmatprep.subr.mxu0 0.0
      %361 = vmatpush1.msra.mxu0 0.0
      %362 = vmatprep.subr.mxu0 0.0
      %363 = vmatpush1.msra.mxu0 0.0
      %364 = vmatprep.subr.mxu0 0.0
      %365 = vmatpush1.msra.mxu0 0.0
      %366 = vmatprep.subr.mxu0 0.0
      %367 = vmatpush1.msra.mxu0 0.0
      %368 = vmatprep.subr.mxu0 0.0
      %369 = vmatpush1.msra.mxu0 0.0
      %370 = vmatprep.subr.mxu0 0.0
      %371 = vmatpush1.msra.mxu0 0.0
      %372 = vmatprep.subr.mxu0 0.0
      %373 = vmatpush1.msra.mxu0 0.0
      %374 = vmatprep.subr.mxu0 0.0
      %375 = vmatpush1.msra.mxu0 0.0
      %376 = vmatprep.mubr.f32.mxu0 0.0
      %377 = vmatmul.mubr.f32.gmra.mrb[0].mxu0 %v310
      %v378 = vpop.f32.mrb[0].mxu0
      %v379 = vadd.f32 0.0, %v378
      %v380 = vpop.f32.mrb[0].mxu0
      %381 = vdwg.mxu0
      %v382 = vadd.f32 %v299, %v379
      %s383 = sadd.s32 %s216, 2
      %s384 = smul.u32 %s383, 4
      %s385 = scalar_lea.vmem %s199, %s384
      %v386 = vld [vmem:[%s385] sm:$0x7]
      %s387 = scalar_lea.vmem %s1, 64
      %v388 = vld [vmem:[%s387] sm:$0xff]
      %v389 = vld [vmem:[%s387 + $0x8] sm:$0xff]
      %v390 = vld [vmem:[%s387 + $0x10] sm:$0xff]
      %v391 = vld [vmem:[%s387 + $0x18] sm:$0xff]
      %v393 = vsel %vm225, %v386, 0
      %395 = vmatprep.subr.mxu0 0.0
      %396 = vmatpush1.msra.mxu0 %v388
      %397 = vmatprep.subr.mxu0 0.0
      %398 = vmatpush1.msra.mxu0 %v389
      %399 = vmatprep.subr.mxu0 0.0
      %400 = vmatpush1.msra.mxu0 %v390
      %401 = vmatprep.subr.mxu0 0.0
      %402 = vmatpush1.msra.mxu0 %v391
      %403 = vmatprep.subr.mxu0 0.0
      %404 = vmatpush1.msra.mxu0 0.0
      %405 = vmatprep.subr.mxu0 0.0
      %406 = vmatpush1.msra.mxu0 0.0
      %407 = vmatprep.subr.mxu0 0.0
      %408 = vmatpush1.msra.mxu0 0.0
      %409 = vmatprep.subr.mxu0 0.0
      %410 = vmatpush1.msra.mxu0 0.0
      %411 = vmatprep.subr.mxu0 0.0
      %412 = vmatpush1.msra.mxu0 0.0
      %413 = vmatprep.subr.mxu0 0.0
      %414 = vmatpush1.msra.mxu0 0.0
      %415 = vmatprep.subr.mxu0 0.0
      %416 = vmatpush1.msra.mxu0 0.0
      %417 = vmatprep.subr.mxu0 0.0
      %418 = vmatpush1.msra.mxu0 0.0
      %419 = vmatprep.subr.mxu0 0.0
      %420 = vmatpush1.msra.mxu0 0.0
      %421 = vmatprep.subr.mxu0 0.0
      %422 = vmatpush1.msra.mxu0 0.0
      %423 = vmatprep.subr.mxu0 0.0
      %424 = vmatpush1.msra.mxu0 0.0
      %425 = vmatprep.subr.mxu0 0.0
      %426 = vmatpush1.msra.mxu0 0.0
      %427 = vmatprep.subr.mxu0 0.0
      %428 = vmatpush1.msra.mxu0 0.0
      %429 = vmatprep.subr.mxu0 0.0
      %430 = vmatpush1.msra.mxu0 0.0
      %431 = vmatprep.subr.mxu0 0.0
      %432 = vmatpush1.msra.mxu0 0.0
      %433 = vmatprep.subr.mxu0 0.0
      %434 = vmatpush1.msra.mxu0 0.0
      %435 = vmatprep.subr.mxu0 0.0
      %436 = vmatpush1.msra.mxu0 0.0
      %437 = vmatprep.subr.mxu0 0.0
      %438 = vmatpush1.msra.mxu0 0.0
      %439 = vmatprep.subr.mxu0 0.0
      %440 = vmatpush1.msra.mxu0 0.0
      %441 = vmatprep.subr.mxu0 0.0
      %442 = vmatpush1.msra.mxu0 0.0
      %443 = vmatprep.subr.mxu0 0.0
      %444 = vmatpush1.msra.mxu0 0.0
      %445 = vmatprep.subr.mxu0 0.0
      %446 = vmatpush1.msra.mxu0 0.0
      %447 = vmatprep.subr.mxu0 0.0
      %448 = vmatpush1.msra.mxu0 0.0
      %449 = vmatprep.subr.mxu0 0.0
      %450 = vmatpush1.msra.mxu0 0.0
      %451 = vmatprep.subr.mxu0 0.0
      %452 = vmatpush1.msra.mxu0 0.0
      %453 = vmatprep.subr.mxu0 0.0
      %454 = vmatpush1.msra.mxu0 0.0
      %455 = vmatprep.subr.mxu0 0.0
      %456 = vmatpush1.msra.mxu0 0.0
      %457 = vmatprep.subr.mxu0 0.0
      %458 = vmatpush1.msra.mxu0 0.0
      %459 = vmatprep.mubr.f32.mxu0 0.0
      %460 = vmatmul.mubr.f32.gmra.mrb[0].mxu0 %v393
      %v461 = vpop.f32.mrb[0].mxu0
      %v462 = vadd.f32 0.0, %v461
      %v463 = vpop.f32.mrb[0].mxu0
      %464 = vdwg.mxu0
      %v465 = vadd.f32 %v382, %v462
      %s466 = sadd.s32 %s216, 3
      %s467 = smul.u32 %s466, 4
      %s468 = scalar_lea.vmem %s199, %s467
      %v469 = vld [vmem:[%s468] sm:$0x7]
      %s470 = scalar_lea.vmem %s1, 96
      %v471 = vld [vmem:[%s470] sm:$0xff]
      %v472 = vld [vmem:[%s470 + $0x8] sm:$0xff]
      %v473 = vld [vmem:[%s470 + $0x10] sm:$0xff]
      %v474 = vld [vmem:[%s470 + $0x18] sm:$0xff]
      %v476 = vsel %vm225, %v469, 0
      %478 = vmatprep.subr.mxu0 0.0
      %479 = vmatpush1.msra.mxu0 %v471
      %480 = vmatprep.subr.mxu0 0.0
      %481 = vmatpush1.msra.mxu0 %v472
      %482 = vmatprep.subr.mxu0 0.0
      %483 = vmatpush1.msra.mxu0 %v473
      %484 = vmatprep.subr.mxu0 0.0
      %485 = vmatpush1.msra.mxu0 %v474
      %486 = vmatprep.subr.mxu0 0.0
      %487 = vmatpush1.msra.mxu0 0.0
      %488 = vmatprep.subr.mxu0 0.0
      %489 = vmatpush1.msra.mxu0 0.0
      %490 = vmatprep.subr.mxu0 0.0
      %491 = vmatpush1.msra.mxu0 0.0
      %492 = vmatprep.subr.mxu0 0.0
      %493 = vmatpush1.msra.mxu0 0.0
      %494 = vmatprep.subr.mxu0 0.0
      %495 = vmatpush1.msra.mxu0 0.0
      %496 = vmatprep.subr.mxu0 0.0
      %497 = vmatpush1.msra.mxu0 0.0
      %498 = vmatprep.subr.mxu0 0.0
      %499 = vmatpush1.msra.mxu0 0.0
      %500 = vmatprep.subr.mxu0 0.0
      %501 = vmatpush1.msra.mxu0 0.0
      %502 = vmatprep.subr.mxu0 0.0
      %503 = vmatpush1.msra.mxu0 0.0
      %504 = vmatprep.subr.mxu0 0.0
      %505 = vmatpush1.msra.mxu0 0.0
      %506 = vmatprep.subr.mxu0 0.0
      %507 = vmatpush1.msra.mxu0 0.0
      %508 = vmatprep.subr.mxu0 0.0
      %509 = vmatpush1.msra.mxu0 0.0
      %510 = vmatprep.subr.mxu0 0.0
      %511 = vmatpush1.msra.mxu0 0.0
      %512 = vmatprep.subr.mxu0 0.0
      %513 = vmatpush1.msra.mxu0 0.0
      %514 = vmatprep.subr.mxu0 0.0
      %515 = vmatpush1.msra.mxu0 0.0
      %516 = vmatprep.subr.mxu0 0.0
      %517 = vmatpush1.msra.mxu0 0.0
      %518 = vmatprep.subr.mxu0 0.0
      %519 = vmatpush1.msra.mxu0 0.0
      %520 = vmatprep.subr.mxu0 0.0
      %521 = vmatpush1.msra.mxu0 0.0
      %522 = vmatprep.subr.mxu0 0.0
      %523 = vmatpush1.msra.mxu0 0.0
      %524 = vmatprep.subr.mxu0 0.0
      %525 = vmatpush1.msra.mxu0 0.0
      %526 = vmatprep.subr.mxu0 0.0
      %527 = vmatpush1.msra.mxu0 0.0
      %528 = vmatprep.subr.mxu0 0.0
      %529 = vmatpush1.msra.mxu0 0.0
      %530 = vmatprep.subr.mxu0 0.0
      %531 = vmatpush1.msra.mxu0 0.0
      %532 = vmatprep.subr.mxu0 0.0
      %533 = vmatpush1.msra.mxu0 0.0
      %534 = vmatprep.subr.mxu0 0.0
      %535 = vmatpush1.msra.mxu0 0.0
      %536 = vmatprep.subr.mxu0 0.0
      %537 = vmatpush1.msra.mxu0 0.0
      %538 = vmatprep.subr.mxu0 0.0
      %539 = vmatpush1.msra.mxu0 0.0
      %540 = vmatprep.subr.mxu0 0.0
      %541 = vmatpush1.msra.mxu0 0.0
      %542 = vmatprep.mubr.f32.mxu0 0.0
      %543 = vmatmul.mubr.f32.gmra.mrb[0].mxu0 %v476
      %v544 = vpop.f32.mrb[0].mxu0
      %v545 = vadd.f32 0.0, %v544
      %v546 = vpop.f32.mrb[0].mxu0
      %547 = vdwg.mxu0
      %v548 = vadd.f32 %v465, %v545
      %s549 = sadd.s32 %s216, 4
      %s550 = smul.u32 %s549, 4
      %s551 = scalar_lea.vmem %s199, %s550
      %v552 = vld [vmem:[%s551] sm:$0x7]
      %s553 = scalar_lea.vmem %s1, 128
      %v554 = vld [vmem:[%s553] sm:$0xff]
      %v555 = vld [vmem:[%s553 + $0x8] sm:$0xff]
      %v556 = vld [vmem:[%s553 + $0x10] sm:$0xff]
      %v557 = vld [vmem:[%s553 + $0x18] sm:$0xff]
      %v559 = vsel %vm225, %v552, 0
      %561 = vmatprep.subr.mxu0 0.0
      %562 = vmatpush1.msra.mxu0 %v554
      %563 = vmatprep.subr.mxu0 0.0
      %564 = vmatpush1.msra.mxu0 %v555
      %565 = vmatprep.subr.mxu0 0.0
      %566 = vmatpush1.msra.mxu0 %v556
      %567 = vmatprep.subr.mxu0 0.0
      %568 = vmatpush1.msra.mxu0 %v557
      %569 = vmatprep.subr.mxu0 0.0
      %570 = vmatpush1.msra.mxu0 0.0
      %571 = vmatprep.subr.mxu0 0.0
      %572 = vmatpush1.msra.mxu0 0.0
      %573 = vmatprep.subr.mxu0 0.0
      %574 = vmatpush1.msra.mxu0 0.0
      %575 = vmatprep.subr.mxu0 0.0
      %576 = vmatpush1.msra.mxu0 0.0
      %577 = vmatprep.subr.mxu0 0.0
      %578 = vmatpush1.msra.mxu0 0.0
      %579 = vmatprep.subr.mxu0 0.0
      %580 = vmatpush1.msra.mxu0 0.0
      %581 = vmatprep.subr.mxu0 0.0
      %582 = vmatpush1.msra.mxu0 0.0
      %583 = vmatprep.subr.mxu0 0.0
      %584 = vmatpush1.msra.mxu0 0.0
      %585 = vmatprep.subr.mxu0 0.0
      %586 = vmatpush1.msra.mxu0 0.0
      %587 = vmatprep.subr.mxu0 0.0
      %588 = vmatpush1.msra.mxu0 0.0
      %589 = vmatprep.subr.mxu0 0.0
      %590 = vmatpush1.msra.mxu0 0.0
      %591 = vmatprep.subr.mxu0 0.0
      %592 = vmatpush1.msra.mxu0 0.0
      %593 = vmatprep.subr.mxu0 0.0
      %594 = vmatpush1.msra.mxu0 0.0
      %595 = vmatprep.subr.mxu0 0.0
      %596 = vmatpush1.msra.mxu0 0.0
      %597 = vmatprep.subr.mxu0 0.0
      %598 = vmatpush1.msra.mxu0 0.0
      %599 = vmatprep.subr.mxu0 0.0
      %600 = vmatpush1.msra.mxu0 0.0
      %601 = vmatprep.subr.mxu0 0.0
      %602 = vmatpush1.msra.mxu0 0.0
      %603 = vmatprep.subr.mxu0 0.0
      %604 = vmatpush1.msra.mxu0 0.0
      %605 = vmatprep.subr.mxu0 0.0
      %606 = vmatpush1.msra.mxu0 0.0
      %607 = vmatprep.subr.mxu0 0.0
      %608 = vmatpush1.msra.mxu0 0.0
      %609 = vmatprep.subr.mxu0 0.0
      %610 = vmatpush1.msra.mxu0 0.0
      %611 = vmatprep.subr.mxu0 0.0
      %612 = vmatpush1.msra.mxu0 0.0
      %613 = vmatprep.subr.mxu0 0.0
      %614 = vmatpush1.msra.mxu0 0.0
      %615 = vmatprep.subr.mxu0 0.0
      %616 = vmatpush1.msra.mxu0 0.0
      %617 = vmatprep.subr.mxu0 0.0
      %618 = vmatpush1.msra.mxu0 0.0
      %619 = vmatprep.subr.mxu0 0.0
      %620 = vmatpush1.msra.mxu0 0.0
      %621 = vmatprep.subr.mxu0 0.0
      %622 = vmatpush1.msra.mxu0 0.0
      %623 = vmatprep.subr.mxu0 0.0
      %624 = vmatpush1.msra.mxu0 0.0
      %625 = vmatprep.mubr.f32.mxu0 0.0
      %626 = vmatmul.mubr.f32.gmra.mrb[0].mxu0 %v559
      %v627 = vpop.f32.mrb[0].mxu0
      %v628 = vadd.f32 0.0, %v627
      %v629 = vpop.f32.mrb[0].mxu0
      %630 = vdwg.mxu0
      %v631 = vadd.f32 %v548, %v628
      %s632 = sadd.s32 %s216, 5
      %s633 = smul.u32 %s632, 4
      %s634 = scalar_lea.vmem %s199, %s633
      %v635 = vld [vmem:[%s634] sm:$0x7]
      %s636 = scalar_lea.vmem %s1, 160
      %v637 = vld [vmem:[%s636] sm:$0xff]
      %v638 = vld [vmem:[%s636 + $0x8] sm:$0xff]
      %v639 = vld [vmem:[%s636 + $0x10] sm:$0xff]
      %v640 = vld [vmem:[%s636 + $0x18] sm:$0xff]
      %v642 = vsel %vm225, %v635, 0
      %644 = vmatprep.subr.mxu0 0.0
      %645 = vmatpush1.msra.mxu0 %v637
      %646 = vmatprep.subr.mxu0 0.0
      %647 = vmatpush1.msra.mxu0 %v638
      %648 = vmatprep.subr.mxu0 0.0
      %649 = vmatpush1.msra.mxu0 %v639
      %650 = vmatprep.subr.mxu0 0.0
      %651 = vmatpush1.msra.mxu0 %v640
      %652 = vmatprep.subr.mxu0 0.0
      %653 = vmatpush1.msra.mxu0 0.0
      %654 = vmatprep.subr.mxu0 0.0
      %655 = vmatpush1.msra.mxu0 0.0
      %656 = vmatprep.subr.mxu0 0.0
      %657 = vmatpush1.msra.mxu0 0.0
      %658 = vmatprep.subr.mxu0 0.0
      %659 = vmatpush1.msra.mxu0 0.0
      %660 = vmatprep.subr.mxu0 0.0
      %661 = vmatpush1.msra.mxu0 0.0
      %662 = vmatprep.subr.mxu0 0.0
      %663 = vmatpush1.msra.mxu0 0.0
      %664 = vmatprep.subr.mxu0 0.0
      %665 = vmatpush1.msra.mxu0 0.0
      %666 = vmatprep.subr.mxu0 0.0
      %667 = vmatpush1.msra.mxu0 0.0
      %668 = vmatprep.subr.mxu0 0.0
      %669 = vmatpush1.msra.mxu0 0.0
      %670 = vmatprep.subr.mxu0 0.0
      %671 = vmatpush1.msra.mxu0 0.0
      %672 = vmatprep.subr.mxu0 0.0
      %673 = vmatpush1.msra.mxu0 0.0
      %674 = vmatprep.subr.mxu0 0.0
      %675 = vmatpush1.msra.mxu0 0.0
      %676 = vmatprep.subr.mxu0 0.0
      %677 = vmatpush1.msra.mxu0 0.0
      %678 = vmatprep.subr.mxu0 0.0
      %679 = vmatpush1.msra.mxu0 0.0
      %680 = vmatprep.subr.mxu0 0.0
      %681 = vmatpush1.msra.mxu0 0.0
      %682 = vmatprep.subr.mxu0 0.0
      %683 = vmatpush1.msra.mxu0 0.0
      %684 = vmatprep.subr.mxu0 0.0
      %685 = vmatpush1.msra.mxu0 0.0
      %686 = vmatprep.subr.mxu0 0.0
      %687 = vmatpush1.msra.mxu0 0.0
      %688 = vmatprep.subr.mxu0 0.0
      %689 = vmatpush1.msra.mxu0 0.0
      %690 = vmatprep.subr.mxu0 0.0
      %691 = vmatpush1.msra.mxu0 0.0
      %692 = vmatprep.subr.mxu0 0.0
      %693 = vmatpush1.msra.mxu0 0.0
      %694 = vmatprep.subr.mxu0 0.0
      %695 = vmatpush1.msra.mxu0 0.0
      %696 = vmatprep.subr.mxu0 0.0
      %697 = vmatpush1.msra.mxu0 0.0
      %698 = vmatprep.subr.mxu0 0.0
      %699 = vmatpush1.msra.mxu0 0.0
      %700 = vmatprep.subr.mxu0 0.0
      %701 = vmatpush1.msra.mxu0 0.0
      %702 = vmatprep.subr.mxu0 0.0
      %703 = vmatpush1.msra.mxu0 0.0
      %704 = vmatprep.subr.mxu0 0.0
      %705 = vmatpush1.msra.mxu0 0.0
      %706 = vmatprep.subr.mxu0 0.0
      %707 = vmatpush1.msra.mxu0 0.0
      %708 = vmatprep.mubr.f32.mxu0 0.0
      %709 = vmatmul.mubr.f32.gmra.mrb[0].mxu0 %v642
      %v710 = vpop.f32.mrb[0].mxu0
      %v711 = vadd.f32 0.0, %v710
      %v712 = vpop.f32.mrb[0].mxu0
      %713 = vdwg.mxu0
      %v714 = vadd.f32 %v631, %v711
      %s715 = sadd.s32 %s216, 6
      %s716 = smul.u32 %s715, 4
      %s717 = scalar_lea.vmem %s199, %s716
      %v718 = vld [vmem:[%s717] sm:$0x7]
      %s719 = scalar_lea.vmem %s1, 192
      %v720 = vld [vmem:[%s719] sm:$0xff]
      %v721 = vld [vmem:[%s719 + $0x8] sm:$0xff]
      %v722 = vld [vmem:[%s719 + $0x10] sm:$0xff]
      %v723 = vld [vmem:[%s719 + $0x18] sm:$0xff]
      %v725 = vsel %vm225, %v718, 0
      %727 = vmatprep.subr.mxu0 0.0
      %728 = vmatpush1.msra.mxu0 %v720
      %729 = vmatprep.subr.mxu0 0.0
      %730 = vmatpush1.msra.mxu0 %v721
      %731 = vmatprep.subr.mxu0 0.0
      %732 = vmatpush1.msra.mxu0 %v722
      %733 = vmatprep.subr.mxu0 0.0
      %734 = vmatpush1.msra.mxu0 %v723
      %735 = vmatprep.subr.mxu0 0.0
      %736 = vmatpush1.msra.mxu0 0.0
      %737 = vmatprep.subr.mxu0 0.0
      %738 = vmatpush1.msra.mxu0 0.0
      %739 = vmatprep.subr.mxu0 0.0
      %740 = vmatpush1.msra.mxu0 0.0
      %741 = vmatprep.subr.mxu0 0.0
      %742 = vmatpush1.msra.mxu0 0.0
      %743 = vmatprep.subr.mxu0 0.0
      %744 = vmatpush1.msra.mxu0 0.0
      %745 = vmatprep.subr.mxu0 0.0
      %746 = vmatpush1.msra.mxu0 0.0
      %747 = vmatprep.subr.mxu0 0.0
      %748 = vmatpush1.msra.mxu0 0.0
      %749 = vmatprep.subr.mxu0 0.0
      %750 = vmatpush1.msra.mxu0 0.0
      %751 = vmatprep.subr.mxu0 0.0
      %752 = vmatpush1.msra.mxu0 0.0
      %753 = vmatprep.subr.mxu0 0.0
      %754 = vmatpush1.msra.mxu0 0.0
      %755 = vmatprep.subr.mxu0 0.0
      %756 = vmatpush1.msra.mxu0 0.0
      %757 = vmatprep.subr.mxu0 0.0
      %758 = vmatpush1.msra.mxu0 0.0
      %759 = vmatprep.subr.mxu0 0.0
      %760 = vmatpush1.msra.mxu0 0.0
      %761 = vmatprep.subr.mxu0 0.0
      %762 = vmatpush1.msra.mxu0 0.0
      %763 = vmatprep.subr.mxu0 0.0
      %764 = vmatpush1.msra.mxu0 0.0
      %765 = vmatprep.subr.mxu0 0.0
      %766 = vmatpush1.msra.mxu0 0.0
      %767 = vmatprep.subr.mxu0 0.0
      %768 = vmatpush1.msra.mxu0 0.0
      %769 = vmatprep.subr.mxu0 0.0
      %770 = vmatpush1.msra.mxu0 0.0
      %771 = vmatprep.subr.mxu0 0.0
      %772 = vmatpush1.msra.mxu0 0.0
      %773 = vmatprep.subr.mxu0 0.0
      %774 = vmatpush1.msra.mxu0 0.0
      %775 = vmatprep.subr.mxu0 0.0
      %776 = vmatpush1.msra.mxu0 0.0
      %777 = vmatprep.subr.mxu0 0.0
      %778 = vmatpush1.msra.mxu0 0.0
      %779 = vmatprep.subr.mxu0 0.0
      %780 = vmatpush1.msra.mxu0 0.0
      %781 = vmatprep.subr.mxu0 0.0
      %782 = vmatpush1.msra.mxu0 0.0
      %783 = vmatprep.subr.mxu0 0.0
      %784 = vmatpush1.msra.mxu0 0.0
      %785 = vmatprep.subr.mxu0 0.0
      %786 = vmatpush1.msra.mxu0 0.0
      %787 = vmatprep.subr.mxu0 0.0
      %788 = vmatpush1.msra.mxu0 0.0
      %789 = vmatprep.subr.mxu0 0.0
      %790 = vmatpush1.msra.mxu0 0.0
      %791 = vmatprep.mubr.f32.mxu0 0.0
      %792 = vmatmul.mubr.f32.gmra.mrb[0].mxu0 %v725
      %v793 = vpop.f32.mrb[0].mxu0
      %v794 = vadd.f32 0.0, %v793
      %v795 = vpop.f32.mrb[0].mxu0
      %796 = vdwg.mxu0
      %v797 = vadd.f32 %v714, %v794
      %s798 = sadd.s32 %s216, 7
      %s799 = smul.u32 %s798, 4
      %s800 = scalar_lea.vmem %s199, %s799
      %v801 = vld [vmem:[%s800] sm:$0x7]
      %s802 = scalar_lea.vmem %s1, 224
      %v803 = vld [vmem:[%s802] sm:$0xff]
      %v804 = vld [vmem:[%s802 + $0x8] sm:$0xff]
      %v805 = vld [vmem:[%s802 + $0x10] sm:$0xff]
      %v806 = vld [vmem:[%s802 + $0x18] sm:$0xff]
      %v808 = vsel %vm225, %v801, 0
      %810 = vmatprep.subr.mxu0 0.0
      %811 = vmatpush1.msra.mxu0 %v803
      %812 = vmatprep.subr.mxu0 0.0
      %813 = vmatpush1.msra.mxu0 %v804
      %814 = vmatprep.subr.mxu0 0.0
      %815 = vmatpush1.msra.mxu0 %v805
      %816 = vmatprep.subr.mxu0 0.0
      %817 = vmatpush1.msra.mxu0 %v806
      %818 = vmatprep.subr.mxu0 0.0
      %819 = vmatpush1.msra.mxu0 0.0
      %820 = vmatprep.subr.mxu0 0.0
      %821 = vmatpush1.msra.mxu0 0.0
      %822 = vmatprep.subr.mxu0 0.0
      %823 = vmatpush1.msra.mxu0 0.0
      %824 = vmatprep.subr.mxu0 0.0
      %825 = vmatpush1.msra.mxu0 0.0
      %826 = vmatprep.subr.mxu0 0.0
      %827 = vmatpush1.msra.mxu0 0.0
      %828 = vmatprep.subr.mxu0 0.0
      %829 = vmatpush1.msra.mxu0 0.0
      %830 = vmatprep.subr.mxu0 0.0
      %831 = vmatpush1.msra.mxu0 0.0
      %832 = vmatprep.subr.mxu0 0.0
      %833 = vmatpush1.msra.mxu0 0.0
      %834 = vmatprep.subr.mxu0 0.0
      %835 = vmatpush1.msra.mxu0 0.0
      %836 = vmatprep.subr.mxu0 0.0
      %837 = vmatpush1.msra.mxu0 0.0
      %838 = vmatprep.subr.mxu0 0.0
      %839 = vmatpush1.msra.mxu0 0.0
      %840 = vmatprep.subr.mxu0 0.0
      %841 = vmatpush1.msra.mxu0 0.0
      %842 = vmatprep.subr.mxu0 0.0
      %843 = vmatpush1.msra.mxu0 0.0
      %844 = vmatprep.subr.mxu0 0.0
      %845 = vmatpush1.msra.mxu0 0.0
      %846 = vmatprep.subr.mxu0 0.0
      %847 = vmatpush1.msra.mxu0 0.0
      %848 = vmatprep.subr.mxu0 0.0
      %849 = vmatpush1.msra.mxu0 0.0
      %850 = vmatprep.subr.mxu0 0.0
      %851 = vmatpush1.msra.mxu0 0.0
      %852 = vmatprep.subr.mxu0 0.0
      %853 = vmatpush1.msra.mxu0 0.0
      %854 = vmatprep.subr.mxu0 0.0
      %855 = vmatpush1.msra.mxu0 0.0
      %856 = vmatprep.subr.mxu0 0.0
      %857 = vmatpush1.msra.mxu0 0.0
      %858 = vmatprep.subr.mxu0 0.0
      %859 = vmatpush1.msra.mxu0 0.0
      %860 = vmatprep.subr.mxu0 0.0
      %861 = vmatpush1.msra.mxu0 0.0
      %862 = vmatprep.subr.mxu0 0.0
      %863 = vmatpush1.msra.mxu0 0.0
      %864 = vmatprep.subr.mxu0 0.0
      %865 = vmatpush1.msra.mxu0 0.0
      %866 = vmatprep.subr.mxu0 0.0
      %867 = vmatpush1.msra.mxu0 0.0
      %868 = vmatprep.subr.mxu0 0.0
      %869 = vmatpush1.msra.mxu0 0.0
      %870 = vmatprep.subr.mxu0 0.0
      %871 = vmatpush1.msra.mxu0 0.0
      %872 = vmatprep.subr.mxu0 0.0
      %873 = vmatpush1.msra.mxu0 0.0
      %874 = vmatprep.mubr.f32.mxu0 0.0
      %875 = vmatmul.mubr.f32.gmra.mrb[0].mxu0 %v808
      %v876 = vpop.f32.mrb[0].mxu0
      %v877 = vadd.f32 0.0, %v876
      %v878 = vpop.f32.mrb[0].mxu0
      %879 = vdwg.mxu0
      %v880 = vadd.f32 %v797, %v877
      %vm881 = vcmask 256000
      %882 = vst.msk [vmem:[%s214] sm:$0x7] %vm881, %v880
      %s883 = scalar_lea.vmem %s204, 4
      %v884 = vld [vmem:[%s883] sm:$0x7]
      %v885 = vld [vmem:[%s551] sm:$0x7]
      %v886 = vld [vmem:[%s1] sm:$0xff]
      %v887 = vld [vmem:[%s1 + $0x8] sm:$0xff]
      %v888 = vld [vmem:[%s1 + $0x10] sm:$0xff]
      %v889 = vld [vmem:[%s1 + $0x18] sm:$0xff]
      %v891 = vsel %vm225, %v885, 0
      %893 = vmatprep.subr.mxu0 0.0
      %894 = vmatpush1.msra.mxu0 %v886
      %895 = vmatprep.subr.mxu0 0.0
      %896 = vmatpush1.msra.mxu0 %v887
      %897 = vmatprep.subr.mxu0 0.0
      %898 = vmatpush1.msra.mxu0 %v888
      %899 = vmatprep.subr.mxu0 0.0
      %900 = vmatpush1.msra.mxu0 %v889
      %901 = vmatprep.subr.mxu0 0.0
      %902 = vmatpush1.msra.mxu0 0.0
      %903 = vmatprep.subr.mxu0 0.0
      %904 = vmatpush1.msra.mxu0 0.0
      %905 = vmatprep.subr.mxu0 0.0
      %906 = vmatpush1.msra.mxu0 0.0
      %907 = vmatprep.subr.mxu0 0.0
      %908 = vmatpush1.msra.mxu0 0.0
      %909 = vmatprep.subr.mxu0 0.0
      %910 = vmatpush1.msra.mxu0 0.0
      %911 = vmatprep.subr.mxu0 0.0
      %912 = vmatpush1.msra.mxu0 0.0
      %913 = vmatprep.subr.mxu0 0.0
      %914 = vmatpush1.msra.mxu0 0.0
      %915 = vmatprep.subr.mxu0 0.0
      %916 = vmatpush1.msra.mxu0 0.0
      %917 = vmatprep.subr.mxu0 0.0
      %918 = vmatpush1.msra.mxu0 0.0
      %919 = vmatprep.subr.mxu0 0.0
      %920 = vmatpush1.msra.mxu0 0.0
      %921 = vmatprep.subr.mxu0 0.0
      %922 = vmatpush1.msra.mxu0 0.0
      %923 = vmatprep.subr.mxu0 0.0
      %924 = vmatpush1.msra.mxu0 0.0
      %925 = vmatprep.subr.mxu0 0.0
      %926 = vmatpush1.msra.mxu0 0.0
      %927 = vmatprep.subr.mxu0 0.0
      %928 = vmatpush1.msra.mxu0 0.0
      %929 = vmatprep.subr.mxu0 0.0
      %930 = vmatpush1.msra.mxu0 0.0
      %931 = vmatprep.subr.mxu0 0.0
      %932 = vmatpush1.msra.mxu0 0.0
      %933 = vmatprep.subr.mxu0 0.0
      %934 = vmatpush1.msra.mxu0 0.0
      %935 = vmatprep.subr.mxu0 0.0
      %936 = vmatpush1.msra.mxu0 0.0
      %937 = vmatprep.subr.mxu0 0.0
      %938 = vmatpush1.msra.mxu0 0.0
      %939 = vmatprep.subr.mxu0 0.0
      %940 = vmatpush1.msra.mxu0 0.0
      %941 = vmatprep.subr.mxu0 0.0
      %942 = vmatpush1.msra.mxu0 0.0
      %943 = vmatprep.subr.mxu0 0.0
      %944 = vmatpush1.msra.mxu0 0.0
      %945 = vmatprep.subr.mxu0 0.0
      %946 = vmatpush1.msra.mxu0 0.0
      %947 = vmatprep.subr.mxu0 0.0
      %948 = vmatpush1.msra.mxu0 0.0
      %949 = vmatprep.subr.mxu0 0.0
      %950 = vmatpush1.msra.mxu0 0.0
      %951 = vmatprep.subr.mxu0 0.0
      %952 = vmatpush1.msra.mxu0 0.0
      %953 = vmatprep.subr.mxu0 0.0
      %954 = vmatpush1.msra.mxu0 0.0
      %955 = vmatprep.subr.mxu0 0.0
      %956 = vmatpush1.msra.mxu0 0.0
      %957 = vmatprep.mubr.f32.mxu0 0.0
      %958 = vmatmul.mubr.f32.gmra.mrb[0].mxu0 %v891
      %v959 = vpop.f32.mrb[0].mxu0
      %v960 = vadd.f32 0.0, %v959
      %v961 = vpop.f32.mrb[0].mxu0
      %962 = vdwg.mxu0
      %v963 = vadd.f32 %v884, %v960
      %v964 = vld [vmem:[%s634] sm:$0x7]
      %v965 = vld [vmem:[%s304] sm:$0xff]
      %v966 = vld [vmem:[%s304 + $0x8] sm:$0xff]
      %v967 = vld [vmem:[%s304 + $0x10] sm:$0xff]
      %v968 = vld [vmem:[%s304 + $0x18] sm:$0xff]
      %v970 = vsel %vm225, %v964, 0
      %972 = vmatprep.subr.mxu0 0.0
      %973 = vmatpush1.msra.mxu0 %v965
      %974 = vmatprep.subr.mxu0 0.0
      %975 = vmatpush1.msra.mxu0 %v966
      %976 = vmatprep.subr.mxu0 0.0
      %977 = vmatpush1.msra.mxu0 %v967
      %978 = vmatprep.subr.mxu0 0.0
      %979 = vmatpush1.msra.mxu0 %v968
      %980 = vmatprep.subr.mxu0 0.0
      %981 = vmatpush1.msra.mxu0 0.0
      %982 = vmatprep.subr.mxu0 0.0
      %983 = vmatpush1.msra.mxu0 0.0
      %984 = vmatprep.subr.mxu0 0.0
      %985 = vmatpush1.msra.mxu0 0.0
      %986 = vmatprep.subr.mxu0 0.0
      %987 = vmatpush1.msra.mxu0 0.0
      %988 = vmatprep.subr.mxu0 0.0
      %989 = vmatpush1.msra.mxu0 0.0
      %990 = vmatprep.subr.mxu0 0.0
      %991 = vmatpush1.msra.mxu0 0.0
      %992 = vmatprep.subr.mxu0 0.0
      %993 = vmatpush1.msra.mxu0 0.0
      %994 = vmatprep.subr.mxu0 0.0
      %995 = vmatpush1.msra.mxu0 0.0
      %996 = vmatprep.subr.mxu0 0.0
      %997 = vmatpush1.msra.mxu0 0.0
      %998 = vmatprep.subr.mxu0 0.0
      %999 = vmatpush1.msra.mxu0 0.0
      %1000 = vmatprep.subr.mxu0 0.0
      %1001 = vmatpush1.msra.mxu0 0.0
      %1002 = vmatprep.subr.mxu0 0.0
      %1003 = vmatpush1.msra.mxu0 0.0
      %1004 = vmatprep.subr.mxu0 0.0
      %1005 = vmatpush1.msra.mxu0 0.0
      %1006 = vmatprep.subr.mxu0 0.0
      %1007 = vmatpush1.msra.mxu0 0.0
      %1008 = vmatprep.subr.mxu0 0.0
      %1009 = vmatpush1.msra.mxu0 0.0
      %1010 = vmatprep.subr.mxu0 0.0
      %1011 = vmatpush1.msra.mxu0 0.0
      %1012 = vmatprep.subr.mxu0 0.0
      %1013 = vmatpush1.msra.mxu0 0.0
      %1014 = vmatprep.subr.mxu0 0.0
      %1015 = vmatpush1.msra.mxu0 0.0
      %1016 = vmatprep.subr.mxu0 0.0
      %1017 = vmatpush1.msra.mxu0 0.0
      %1018 = vmatprep.subr.mxu0 0.0
      %1019 = vmatpush1.msra.mxu0 0.0
      %1020 = vmatprep.subr.mxu0 0.0
      %1021 = vmatpush1.msra.mxu0 0.0
      %1022 = vmatprep.subr.mxu0 0.0
      %1023 = vmatpush1.msra.mxu0 0.0
      %1024 = vmatprep.subr.mxu0 0.0
      %1025 = vmatpush1.msra.mxu0 0.0
      %1026 = vmatprep.subr.mxu0 0.0
      %1027 = vmatpush1.msra.mxu0 0.0
      %1028 = vmatprep.subr.mxu0 0.0
      %1029 = vmatpush1.msra.mxu0 0.0
      %1030 = vmatprep.subr.mxu0 0.0
      %1031 = vmatpush1.msra.mxu0 0.0
      %1032 = vmatprep.subr.mxu0 0.0
      %1033 = vmatpush1.msra.mxu0 0.0
      %1034 = vmatprep.subr.mxu0 0.0
      %1035 = vmatpush1.msra.mxu0 0.0
      %1036 = vmatprep.mubr.f32.mxu0 0.0
      %1037 = vmatmul.mubr.f32.gmra.mrb[0].mxu0 %v970
      %v1038 = vpop.f32.mrb[0].mxu0
      %v1039 = vadd.f32 0.0, %v1038
      %v1040 = vpop.f32.mrb[0].mxu0
      %1041 = vdwg.mxu0
      %v1042 = vadd.f32 %v963, %v1039
      %v1043 = vld [vmem:[%s717] sm:$0x7]
      %v1044 = vld [vmem:[%s387] sm:$0xff]
      %v1045 = vld [vmem:[%s387 + $0x8] sm:$0xff]
      %v1046 = vld [vmem:[%s387 + $0x10] sm:$0xff]
      %v1047 = vld [vmem:[%s387 + $0x18] sm:$0xff]
      %v1049 = vsel %vm225, %v1043, 0
      %1051 = vmatprep.subr.mxu0 0.0
      %1052 = vmatpush1.msra.mxu0 %v1044
      %1053 = vmatprep.subr.mxu0 0.0
      %1054 = vmatpush1.msra.mxu0 %v1045
      %1055 = vmatprep.subr.mxu0 0.0
      %1056 = vmatpush1.msra.mxu0 %v1046
      %1057 = vmatprep.subr.mxu0 0.0
      %1058 = vmatpush1.msra.mxu0 %v1047
      %1059 = vmatprep.subr.mxu0 0.0
      %1060 = vmatpush1.msra.mxu0 0.0
      %1061 = vmatprep.subr.mxu0 0.0
      %1062 = vmatpush1.msra.mxu0 0.0
      %1063 = vmatprep.subr.mxu0 0.0
      %1064 = vmatpush1.msra.mxu0 0.0
      %1065 = vmatprep.subr.mxu0 0.0
      %1066 = vmatpush1.msra.mxu0 0.0
      %1067 = vmatprep.subr.mxu0 0.0
      %1068 = vmatpush1.msra.mxu0 0.0
      %1069 = vmatprep.subr.mxu0 0.0
      %1070 = vmatpush1.msra.mxu0 0.0
      %1071 = vmatprep.subr.mxu0 0.0
      %1072 = vmatpush1.msra.mxu0 0.0
      %1073 = vmatprep.subr.mxu0 0.0
      %1074 = vmatpush1.msra.mxu0 0.0
      %1075 = vmatprep.subr.mxu0 0.0
      %1076 = vmatpush1.msra.mxu0 0.0
      %1077 = vmatprep.subr.mxu0 0.0
      %1078 = vmatpush1.msra.mxu0 0.0
      %1079 = vmatprep.subr.mxu0 0.0
      %1080 = vmatpush1.msra.mxu0 0.0
      %1081 = vmatprep.subr.mxu0 0.0
      %1082 = vmatpush1.msra.mxu0 0.0
      %1083 = vmatprep.subr.mxu0 0.0
      %1084 = vmatpush1.msra.mxu0 0.0
      %1085 = vmatprep.subr.mxu0 0.0
      %1086 = vmatpush1.msra.mxu0 0.0
      %1087 = vmatprep.subr.mxu0 0.0
      %1088 = vmatpush1.msra.mxu0 0.0
      %1089 = vmatprep.subr.mxu0 0.0
      %1090 = vmatpush1.msra.mxu0 0.0
      %1091 = vmatprep.subr.mxu0 0.0
      %1092 = vmatpush1.msra.mxu0 0.0
      %1093 = vmatprep.subr.mxu0 0.0
      %1094 = vmatpush1.msra.mxu0 0.0
      %1095 = vmatprep.subr.mxu0 0.0
      %1096 = vmatpush1.msra.mxu0 0.0
      %1097 = vmatprep.subr.mxu0 0.0
      %1098 = vmatpush1.msra.mxu0 0.0
      %1099 = vmatprep.subr.mxu0 0.0
      %1100 = vmatpush1.msra.mxu0 0.0
      %1101 = vmatprep.subr.mxu0 0.0
      %1102 = vmatpush1.msra.mxu0 0.0
      %1103 = vmatprep.subr.mxu0 0.0
      %1104 = vmatpush1.msra.mxu0 0.0
      %1105 = vmatprep.subr.mxu0 0.0
      %1106 = vmatpush1.msra.mxu0 0.0
      %1107 = vmatprep.subr.mxu0 0.0
      %1108 = vmatpush1.msra.mxu0 0.0
      %1109 = vmatprep.subr.mxu0 0.0
      %1110 = vmatpush1.msra.mxu0 0.0
      %1111 = vmatprep.subr.mxu0 0.0
      %1112 = vmatpush1.msra.mxu0 0.0
      %1113 = vmatprep.subr.mxu0 0.0
      %1114 = vmatpush1.msra.mxu0 0.0
      %1115 = vmatprep.mubr.f32.mxu0 0.0
      %1116 = vmatmul.mubr.f32.gmra.mrb[0].mxu0 %v1049
      %v1117 = vpop.f32.mrb[0].mxu0
      %v1118 = vadd.f32 0.0, %v1117
      %v1119 = vpop.f32.mrb[0].mxu0
      %1120 = vdwg.mxu0
      %v1121 = vadd.f32 %v1042, %v1118
      %v1122 = vld [vmem:[%s800] sm:$0x7]
      %v1123 = vld [vmem:[%s470] sm:$0xff]
      %v1124 = vld [vmem:[%s470 + $0x8] sm:$0xff]
      %v1125 = vld [vmem:[%s470 + $0x10] sm:$0xff]
      %v1126 = vld [vmem:[%s470 + $0x18] sm:$0xff]
      %v1128 = vsel %vm225, %v1122, 0
      %1130 = vmatprep.subr.mxu0 0.0
      %1131 = vmatpush1.msra.mxu0 %v1123
      %1132 = vmatprep.subr.mxu0 0.0
      %1133 = vmatpush1.msra.mxu0 %v1124
      %1134 = vmatprep.subr.mxu0 0.0
      %1135 = vmatpush1.msra.mxu0 %v1125
      %1136 = vmatprep.subr.mxu0 0.0
      %1137 = vmatpush1.msra.mxu0 %v1126
      %1138 = vmatprep.subr.mxu0 0.0
      %1139 = vmatpush1.msra.mxu0 0.0
      %1140 = vmatprep.subr.mxu0 0.0
      %1141 = vmatpush1.msra.mxu0 0.0
      %1142 = vmatprep.subr.mxu0 0.0
      %1143 = vmatpush1.msra.mxu0 0.0
      %1144 = vmatprep.subr.mxu0 0.0
      %1145 = vmatpush1.msra.mxu0 0.0
      %1146 = vmatprep.subr.mxu0 0.0
      %1147 = vmatpush1.msra.mxu0 0.0
      %1148 = vmatprep.subr.mxu0 0.0
      %1149 = vmatpush1.msra.mxu0 0.0
      %1150 = vmatprep.subr.mxu0 0.0
      %1151 = vmatpush1.msra.mxu0 0.0
      %1152 = vmatprep.subr.mxu0 0.0
      %1153 = vmatpush1.msra.mxu0 0.0
      %1154 = vmatprep.subr.mxu0 0.0
      %1155 = vmatpush1.msra.mxu0 0.0
      %1156 = vmatprep.subr.mxu0 0.0
      %1157 = vmatpush1.msra.mxu0 0.0
      %1158 = vmatprep.subr.mxu0 0.0
      %1159 = vmatpush1.msra.mxu0 0.0
      %1160 = vmatprep.subr.mxu0 0.0
      %1161 = vmatpush1.msra.mxu0 0.0
      %1162 = vmatprep.subr.mxu0 0.0
      %1163 = vmatpush1.msra.mxu0 0.0
      %1164 = vmatprep.subr.mxu0 0.0
      %1165 = vmatpush1.msra.mxu0 0.0
      %1166 = vmatprep.subr.mxu0 0.0
      %1167 = vmatpush1.msra.mxu0 0.0
      %1168 = vmatprep.subr.mxu0 0.0
      %1169 = vmatpush1.msra.mxu0 0.0
      %1170 = vmatprep.subr.mxu0 0.0
      %1171 = vmatpush1.msra.mxu0 0.0
      %1172 = vmatprep.subr.mxu0 0.0
      %1173 = vmatpush1.msra.mxu0 0.0
      %1174 = vmatprep.subr.mxu0 0.0
      %1175 = vmatpush1.msra.mxu0 0.0
      %1176 = vmatprep.subr.mxu0 0.0
      %1177 = vmatpush1.msra.mxu0 0.0
      %1178 = vmatprep.subr.mxu0 0.0
      %1179 = vmatpush1.msra.mxu0 0.0
      %1180 = vmatprep.subr.mxu0 0.0
      %1181 = vmatpush1.msra.mxu0 0.0
      %1182 = vmatprep.subr.mxu0 0.0
      %1183 = vmatpush1.msra.mxu0 0.0
      %1184 = vmatprep.subr.mxu0 0.0
      %1185 = vmatpush1.msra.mxu0 0.0
      %1186 = vmatprep.subr.mxu0 0.0
      %1187 = vmatpush1.msra.mxu0 0.0
      %1188 = vmatprep.subr.mxu0 0.0
      %1189 = vmatpush1.msra.mxu0 0.0
      %1190 = vmatprep.subr.mxu0 0.0
      %1191 = vmatpush1.msra.mxu0 0.0
      %1192 = vmatprep.subr.mxu0 0.0
      %1193 = vmatpush1.msra.mxu0 0.0
      %1194 = vmatprep.mubr.f32.mxu0 0.0
      %1195 = vmatmul.mubr.f32.gmra.mrb[0].mxu0 %v1128
      %v1196 = vpop.f32.mrb[0].mxu0
      %v1197 = vadd.f32 0.0, %v1196
      %v1198 = vpop.f32.mrb[0].mxu0
      %1199 = vdwg.mxu0
      %v1200 = vadd.f32 %v1121, %v1197
      %s1201 = sadd.s32 %s216, 8
      %s1202 = smul.u32 %s1201, 4
      %s1203 = scalar_lea.vmem %s199, %s1202
      %v1204 = vld [vmem:[%s1203] sm:$0x7]
      %v1205 = vld [vmem:[%s553] sm:$0xff]
      %v1206 = vld [vmem:[%s553 + $0x8] sm:$0xff]
      %v1207 = vld [vmem:[%s553 + $0x10] sm:$0xff]
      %v1208 = vld [vmem:[%s553 + $0x18] sm:$0xff]
      %v1210 = vsel %vm225, %v1204, 0
      %1212 = vmatprep.subr.mxu0 0.0
      %1213 = vmatpush1.msra.mxu0 %v1205
      %1214 = vmatprep.subr.mxu0 0.0
      %1215 = vmatpush1.msra.mxu0 %v1206
      %1216 = vmatprep.subr.mxu0 0.0
      %1217 = vmatpush1.msra.mxu0 %v1207
      %1218 = vmatprep.subr.mxu0 0.0
      %1219 = vmatpush1.msra.mxu0 %v1208
      %1220 = vmatprep.subr.mxu0 0.0
      %1221 = vmatpush1.msra.mxu0 0.0
      %1222 = vmatprep.subr.mxu0 0.0
      %1223 = vmatpush1.msra.mxu0 0.0
      %1224 = vmatprep.subr.mxu0 0.0
      %1225 = vmatpush1.msra.mxu0 0.0
      %1226 = vmatprep.subr.mxu0 0.0
      %1227 = vmatpush1.msra.mxu0 0.0
      %1228 = vmatprep.subr.mxu0 0.0
      %1229 = vmatpush1.msra.mxu0 0.0
      %1230 = vmatprep.subr.mxu0 0.0
      %1231 = vmatpush1.msra.mxu0 0.0
      %1232 = vmatprep.subr.mxu0 0.0
      %1233 = vmatpush1.msra.mxu0 0.0
      %1234 = vmatprep.subr.mxu0 0.0
      %1235 = vmatpush1.msra.mxu0 0.0
      %1236 = vmatprep.subr.mxu0 0.0
      %1237 = vmatpush1.msra.mxu0 0.0
      %1238 = vmatprep.subr.mxu0 0.0
      %1239 = vmatpush1.msra.mxu0 0.0
      %1240 = vmatprep.subr.mxu0 0.0
      %1241 = vmatpush1.msra.mxu0 0.0
      %1242 = vmatprep.subr.mxu0 0.0
      %1243 = vmatpush1.msra.mxu0 0.0
      %1244 = vmatprep.subr.mxu0 0.0
      %1245 = vmatpush1.msra.mxu0 0.0
      %1246 = vmatprep.subr.mxu0 0.0
      %1247 = vmatpush1.msra.mxu0 0.0
      %1248 = vmatprep.subr.mxu0 0.0
      %1249 = vmatpush1.msra.mxu0 0.0
      %1250 = vmatprep.subr.mxu0 0.0
      %1251 = vmatpush1.msra.mxu0 0.0
      %1252 = vmatprep.subr.mxu0 0.0
      %1253 = vmatpush1.msra.mxu0 0.0
      %1254 = vmatprep.subr.mxu0 0.0
      %1255 = vmatpush1.msra.mxu0 0.0
      %1256 = vmatprep.subr.mxu0 0.0
      %1257 = vmatpush1.msra.mxu0 0.0
      %1258 = vmatprep.subr.mxu0 0.0
      %1259 = vmatpush1.msra.mxu0 0.0
      %1260 = vmatprep.subr.mxu0 0.0
      %1261 = vmatpush1.msra.mxu0 0.0
      %1262 = vmatprep.subr.mxu0 0.0
      %1263 = vmatpush1.msra.mxu0 0.0
      %1264 = vmatprep.subr.mxu0 0.0
      %1265 = vmatpush1.msra.mxu0 0.0
      %1266 = vmatprep.subr.mxu0 0.0
      %1267 = vmatpush1.msra.mxu0 0.0
      %1268 = vmatprep.subr.mxu0 0.0
      %1269 = vmatpush1.msra.mxu0 0.0
      %1270 = vmatprep.subr.mxu0 0.0
      %1271 = vmatpush1.msra.mxu0 0.0
      %1272 = vmatprep.subr.mxu0 0.0
      %1273 = vmatpush1.msra.mxu0 0.0
      %1274 = vmatprep.subr.mxu0 0.0
      %1275 = vmatpush1.msra.mxu0 0.0
      %1276 = vmatprep.mubr.f32.mxu0 0.0
      %1277 = vmatmul.mubr.f32.gmra.mrb[0].mxu0 %v1210
      %v1278 = vpop.f32.mrb[0].mxu0
      %v1279 = vadd.f32 0.0, %v1278
      %v1280 = vpop.f32.mrb[0].mxu0
      %1281 = vdwg.mxu0
      %v1282 = vadd.f32 %v1200, %v1279
      %s1283 = sadd.s32 %s216, 9
      %s1284 = smul.u32 %s1283, 4
      %s1285 = scalar_lea.vmem %s199, %s1284
      %v1286 = vld [vmem:[%s1285] sm:$0x7]
      %v1287 = vld [vmem:[%s636] sm:$0xff]
      %v1288 = vld [vmem:[%s636 + $0x8] sm:$0xff]
      %v1289 = vld [vmem:[%s636 + $0x10] sm:$0xff]
      %v1290 = vld [vmem:[%s636 + $0x18] sm:$0xff]
      %v1292 = vsel %vm225, %v1286, 0
      %1294 = vmatprep.subr.mxu0 0.0
      %1295 = vmatpush1.msra.mxu0 %v1287
      %1296 = vmatprep.subr.mxu0 0.0
      %1297 = vmatpush1.msra.mxu0 %v1288
      %1298 = vmatprep.subr.mxu0 0.0
      %1299 = vmatpush1.msra.mxu0 %v1289
      %1300 = vmatprep.subr.mxu0 0.0
      %1301 = vmatpush1.msra.mxu0 %v1290
      %1302 = vmatprep.subr.mxu0 0.0
      %1303 = vmatpush1.msra.mxu0 0.0
      %1304 = vmatprep.subr.mxu0 0.0
      %1305 = vmatpush1.msra.mxu0 0.0
      %1306 = vmatprep.subr.mxu0 0.0
      %1307 = vmatpush1.msra.mxu0 0.0
      %1308 = vmatprep.subr.mxu0 0.0
      %1309 = vmatpush1.msra.mxu0 0.0
      %1310 = vmatprep.subr.mxu0 0.0
      %1311 = vmatpush1.msra.mxu0 0.0
      %1312 = vmatprep.subr.mxu0 0.0
      %1313 = vmatpush1.msra.mxu0 0.0
      %1314 = vmatprep.subr.mxu0 0.0
      %1315 = vmatpush1.msra.mxu0 0.0
      %1316 = vmatprep.subr.mxu0 0.0
      %1317 = vmatpush1.msra.mxu0 0.0
      %1318 = vmatprep.subr.mxu0 0.0
      %1319 = vmatpush1.msra.mxu0 0.0
      %1320 = vmatprep.subr.mxu0 0.0
      %1321 = vmatpush1.msra.mxu0 0.0
      %1322 = vmatprep.subr.mxu0 0.0
      %1323 = vmatpush1.msra.mxu0 0.0
      %1324 = vmatprep.subr.mxu0 0.0
      %1325 = vmatpush1.msra.mxu0 0.0
      %1326 = vmatprep.subr.mxu0 0.0
      %1327 = vmatpush1.msra.mxu0 0.0
      %1328 = vmatprep.subr.mxu0 0.0
      %1329 = vmatpush1.msra.mxu0 0.0
      %1330 = vmatprep.subr.mxu0 0.0
      %1331 = vmatpush1.msra.mxu0 0.0
      %1332 = vmatprep.subr.mxu0 0.0
      %1333 = vmatpush1.msra.mxu0 0.0
      %1334 = vmatprep.subr.mxu0 0.0
      %1335 = vmatpush1.msra.mxu0 0.0
      %1336 = vmatprep.subr.mxu0 0.0
      %1337 = vmatpush1.msra.mxu0 0.0
      %1338 = vmatprep.subr.mxu0 0.0
      %1339 = vmatpush1.msra.mxu0 0.0
      %1340 = vmatprep.subr.mxu0 0.0
      %1341 = vmatpush1.msra.mxu0 0.0
      %1342 = vmatprep.subr.mxu0 0.0
      %1343 = vmatpush1.msra.mxu0 0.0
      %1344 = vmatprep.subr.mxu0 0.0
      %1345 = vmatpush1.msra.mxu0 0.0
      %1346 = vmatprep.subr.mxu0 0.0
      %1347 = vmatpush1.msra.mxu0 0.0
      %1348 = vmatprep.subr.mxu0 0.0
      %1349 = vmatpush1.msra.mxu0 0.0
      %1350 = vmatprep.subr.mxu0 0.0
      %1351 = vmatpush1.msra.mxu0 0.0
      %1352 = vmatprep.subr.mxu0 0.0
      %1353 = vmatpush1.msra.mxu0 0.0
      %1354 = vmatprep.subr.mxu0 0.0
      %1355 = vmatpush1.msra.mxu0 0.0
      %1356 = vmatprep.subr.mxu0 0.0
      %1357 = vmatpush1.msra.mxu0 0.0
      %1358 = vmatprep.mubr.f32.mxu0 0.0
      %1359 = vmatmul.mubr.f32.gmra.mrb[0].mxu0 %v1292
      %v1360 = vpop.f32.mrb[0].mxu0
      %v1361 = vadd.f32 0.0, %v1360
      %v1362 = vpop.f32.mrb[0].mxu0
      %1363 = vdwg.mxu0
      %v1364 = vadd.f32 %v1282, %v1361
      %s1365 = sadd.s32 %s216, 10
      %s1366 = smul.u32 %s1365, 4
      %s1367 = scalar_lea.vmem %s199, %s1366
      %v1368 = vld [vmem:[%s1367] sm:$0x7]
      %v1369 = vld [vmem:[%s719] sm:$0xff]
      %v1370 = vld [vmem:[%s719 + $0x8] sm:$0xff]
      %v1371 = vld [vmem:[%s719 + $0x10] sm:$0xff]
      %v1372 = vld [vmem:[%s719 + $0x18] sm:$0xff]
      %v1374 = vsel %vm225, %v1368, 0
      %1376 = vmatprep.subr.mxu0 0.0
      %1377 = vmatpush1.msra.mxu0 %v1369
      %1378 = vmatprep.subr.mxu0 0.0
      %1379 = vmatpush1.msra.mxu0 %v1370
      %1380 = vmatprep.subr.mxu0 0.0
      %1381 = vmatpush1.msra.mxu0 %v1371
      %1382 = vmatprep.subr.mxu0 0.0
      %1383 = vmatpush1.msra.mxu0 %v1372
      %1384 = vmatprep.subr.mxu0 0.0
      %1385 = vmatpush1.msra.mxu0 0.0
      %1386 = vmatprep.subr.mxu0 0.0
      %1387 = vmatpush1.msra.mxu0 0.0
      %1388 = vmatprep.subr.mxu0 0.0
      %1389 = vmatpush1.msra.mxu0 0.0
      %1390 = vmatprep.subr.mxu0 0.0
      %1391 = vmatpush1.msra.mxu0 0.0
      %1392 = vmatprep.subr.mxu0 0.0
      %1393 = vmatpush1.msra.mxu0 0.0
      %1394 = vmatprep.subr.mxu0 0.0
      %1395 = vmatpush1.msra.mxu0 0.0
      %1396 = vmatprep.subr.mxu0 0.0
      %1397 = vmatpush1.msra.mxu0 0.0
      %1398 = vmatprep.subr.mxu0 0.0
      %1399 = vmatpush1.msra.mxu0 0.0
      %1400 = vmatprep.subr.mxu0 0.0
      %1401 = vmatpush1.msra.mxu0 0.0
      %1402 = vmatprep.subr.mxu0 0.0
      %1403 = vmatpush1.msra.mxu0 0.0
      %1404 = vmatprep.subr.mxu0 0.0
      %1405 = vmatpush1.msra.mxu0 0.0
      %1406 = vmatprep.subr.mxu0 0.0
      %1407 = vmatpush1.msra.mxu0 0.0
      %1408 = vmatprep.subr.mxu0 0.0
      %1409 = vmatpush1.msra.mxu0 0.0
      %1410 = vmatprep.subr.mxu0 0.0
      %1411 = vmatpush1.msra.mxu0 0.0
      %1412 = vmatprep.subr.mxu0 0.0
      %1413 = vmatpush1.msra.mxu0 0.0
      %1414 = vmatprep.subr.mxu0 0.0
      %1415 = vmatpush1.msra.mxu0 0.0
      %1416 = vmatprep.subr.mxu0 0.0
      %1417 = vmatpush1.msra.mxu0 0.0
      %1418 = vmatprep.subr.mxu0 0.0
      %1419 = vmatpush1.msra.mxu0 0.0
      %1420 = vmatprep.subr.mxu0 0.0
      %1421 = vmatpush1.msra.mxu0 0.0
      %1422 = vmatprep.subr.mxu0 0.0
      %1423 = vmatpush1.msra.mxu0 0.0
      %1424 = vmatprep.subr.mxu0 0.0
      %1425 = vmatpush1.msra.mxu0 0.0
      %1426 = vmatprep.subr.mxu0 0.0
      %1427 = vmatpush1.msra.mxu0 0.0
      %1428 = vmatprep.subr.mxu0 0.0
      %1429 = vmatpush1.msra.mxu0 0.0
      %1430 = vmatprep.subr.mxu0 0.0
      %1431 = vmatpush1.msra.mxu0 0.0
      %1432 = vmatprep.subr.mxu0 0.0
      %1433 = vmatpush1.msra.mxu0 0.0
      %1434 = vmatprep.subr.mxu0 0.0
      %1435 = vmatpush1.msra.mxu0 0.0
      %1436 = vmatprep.subr.mxu0 0.0
      %1437 = vmatpush1.msra.mxu0 0.0
      %1438 = vmatprep.subr.mxu0 0.0
      %1439 = vmatpush1.msra.mxu0 0.0
      %1440 = vmatprep.mubr.f32.mxu0 0.0
      %1441 = vmatmul.mubr.f32.gmra.mrb[0].mxu0 %v1374
      %v1442 = vpop.f32.mrb[0].mxu0
      %v1443 = vadd.f32 0.0, %v1442
      %v1444 = vpop.f32.mrb[0].mxu0
      %1445 = vdwg.mxu0
      %v1446 = vadd.f32 %v1364, %v1443
      %s1447 = sadd.s32 %s216, 11
      %s1448 = smul.u32 %s1447, 4
      %s1449 = scalar_lea.vmem %s199, %s1448
      %v1450 = vld [vmem:[%s1449] sm:$0x7]
      %v1451 = vld [vmem:[%s802] sm:$0xff]
      %v1452 = vld [vmem:[%s802 + $0x8] sm:$0xff]
      %v1453 = vld [vmem:[%s802 + $0x10] sm:$0xff]
      %v1454 = vld [vmem:[%s802 + $0x18] sm:$0xff]
      %v1456 = vsel %vm225, %v1450, 0
      %1458 = vmatprep.subr.mxu0 0.0
      %1459 = vmatpush1.msra.mxu0 %v1451
      %1460 = vmatprep.subr.mxu0 0.0
      %1461 = vmatpush1.msra.mxu0 %v1452
      %1462 = vmatprep.subr.mxu0 0.0
      %1463 = vmatpush1.msra.mxu0 %v1453
      %1464 = vmatprep.subr.mxu0 0.0
      %1465 = vmatpush1.msra.mxu0 %v1454
      %1466 = vmatprep.subr.mxu0 0.0
      %1467 = vmatpush1.msra.mxu0 0.0
      %1468 = vmatprep.subr.mxu0 0.0
      %1469 = vmatpush1.msra.mxu0 0.0
      %1470 = vmatprep.subr.mxu0 0.0
      %1471 = vmatpush1.msra.mxu0 0.0
      %1472 = vmatprep.subr.mxu0 0.0
      %1473 = vmatpush1.msra.mxu0 0.0
      %1474 = vmatprep.subr.mxu0 0.0
      %1475 = vmatpush1.msra.mxu0 0.0
      %1476 = vmatprep.subr.mxu0 0.0
      %1477 = vmatpush1.msra.mxu0 0.0
      %1478 = vmatprep.subr.mxu0 0.0
      %1479 = vmatpush1.msra.mxu0 0.0
      %1480 = vmatprep.subr.mxu0 0.0
      %1481 = vmatpush1.msra.mxu0 0.0
      %1482 = vmatprep.subr.mxu0 0.0
      %1483 = vmatpush1.msra.mxu0 0.0
      %1484 = vmatprep.subr.mxu0 0.0
      %1485 = vmatpush1.msra.mxu0 0.0
      %1486 = vmatprep.subr.mxu0 0.0
      %1487 = vmatpush1.msra.mxu0 0.0
      %1488 = vmatprep.subr.mxu0 0.0
      %1489 = vmatpush1.msra.mxu0 0.0
      %1490 = vmatprep.subr.mxu0 0.0
      %1491 = vmatpush1.msra.mxu0 0.0
      %1492 = vmatprep.subr.mxu0 0.0
      %1493 = vmatpush1.msra.mxu0 0.0
      %1494 = vmatprep.subr.mxu0 0.0
      %1495 = vmatpush1.msra.mxu0 0.0
      %1496 = vmatprep.subr.mxu0 0.0
      %1497 = vmatpush1.msra.mxu0 0.0
      %1498 = vmatprep.subr.mxu0 0.0
      %1499 = vmatpush1.msra.mxu0 0.0
      %1500 = vmatprep.subr.mxu0 0.0
      %1501 = vmatpush1.msra.mxu0 0.0
      %1502 = vmatprep.subr.mxu0 0.0
      %1503 = vmatpush1.msra.mxu0 0.0
      %1504 = vmatprep.subr.mxu0 0.0
      %1505 = vmatpush1.msra.mxu0 0.0
      %1506 = vmatprep.subr.mxu0 0.0
      %1507 = vmatpush1.msra.mxu0 0.0
      %1508 = vmatprep.subr.mxu0 0.0
      %1509 = vmatpush1.msra.mxu0 0.0
      %1510 = vmatprep.subr.mxu0 0.0
      %1511 = vmatpush1.msra.mxu0 0.0
      %1512 = vmatprep.subr.mxu0 0.0
      %1513 = vmatpush1.msra.mxu0 0.0
      %1514 = vmatprep.subr.mxu0 0.0
      %1515 = vmatpush1.msra.mxu0 0.0
      %1516 = vmatprep.subr.mxu0 0.0
      %1517 = vmatpush1.msra.mxu0 0.0
      %1518 = vmatprep.subr.mxu0 0.0
      %1519 = vmatpush1.msra.mxu0 0.0
      %1520 = vmatprep.subr.mxu0 0.0
      %1521 = vmatpush1.msra.mxu0 0.0
      %1522 = vmatprep.mubr.f32.mxu0 0.0
      %1523 = vmatmul.mubr.f32.gmra.mrb[0].mxu0 %v1456
      %v1524 = vpop.f32.mrb[0].mxu0
      %v1525 = vadd.f32 0.0, %v1524
      %v1526 = vpop.f32.mrb[0].mxu0
      %1527 = vdwg.mxu0
      %v1528 = vadd.f32 %v1446, %v1525
      %s1529 = scalar_lea.vmem %s214, 4
      %1530 = vst.msk [vmem:[%s1529] sm:$0x7] %vm881, %v1528
      %s1531 = scalar_lea.vmem %s204, 8
      %v1532 = vld [vmem:[%s1531] sm:$0x7]
      %v1533 = vld [vmem:[%s1203] sm:$0x7]
      %v1534 = vld [vmem:[%s1] sm:$0xff]
      %v1535 = vld [vmem:[%s1 + $0x8] sm:$0xff]
      %v1536 = vld [vmem:[%s1 + $0x10] sm:$0xff]
      %v1537 = vld [vmem:[%s1 + $0x18] sm:$0xff]
      %v1539 = vsel %vm225, %v1533, 0
      %1541 = vmatprep.subr.mxu0 0.0
      %1542 = vmatpush1.msra.mxu0 %v1534
      %1543 = vmatprep.subr.mxu0 0.0
      %1544 = vmatpush1.msra.mxu0 %v1535
      %1545 = vmatprep.subr.mxu0 0.0
      %1546 = vmatpush1.msra.mxu0 %v1536
      %1547 = vmatprep.subr.mxu0 0.0
      %1548 = vmatpush1.msra.mxu0 %v1537
      %1549 = vmatprep.subr.mxu0 0.0
      %1550 = vmatpush1.msra.mxu0 0.0
      %1551 = vmatprep.subr.mxu0 0.0
      %1552 = vmatpush1.msra.mxu0 0.0
      %1553 = vmatprep.subr.mxu0 0.0
      %1554 = vmatpush1.msra.mxu0 0.0
      %1555 = vmatprep.subr.mxu0 0.0
      %1556 = vmatpush1.msra.mxu0 0.0
      %1557 = vmatprep.subr.mxu0 0.0
      %1558 = vmatpush1.msra.mxu0 0.0
      %1559 = vmatprep.subr.mxu0 0.0
      %1560 = vmatpush1.msra.mxu0 0.0
      %1561 = vmatprep.subr.mxu0 0.0
      %1562 = vmatpush1.msra.mxu0 0.0
      %1563 = vmatprep.subr.mxu0 0.0
      %1564 = vmatpush1.msra.mxu0 0.0
      %1565 = vmatprep.subr.mxu0 0.0
      %1566 = vmatpush1.msra.mxu0 0.0
      %1567 = vmatprep.subr.mxu0 0.0
      %1568 = vmatpush1.msra.mxu0 0.0
      %1569 = vmatprep.subr.mxu0 0.0
      %1570 = vmatpush1.msra.mxu0 0.0
      %1571 = vmatprep.subr.mxu0 0.0
      %1572 = vmatpush1.msra.mxu0 0.0
      %1573 = vmatprep.subr.mxu0 0.0
      %1574 = vmatpush1.msra.mxu0 0.0
      %1575 = vmatprep.subr.mxu0 0.0
      %1576 = vmatpush1.msra.mxu0 0.0
      %1577 = vmatprep.subr.mxu0 0.0
      %1578 = vmatpush1.msra.mxu0 0.0
      %1579 = vmatprep.subr.mxu0 0.0
      %1580 = vmatpush1.msra.mxu0 0.0
      %1581 = vmatprep.subr.mxu0 0.0
      %1582 = vmatpush1.msra.mxu0 0.0
      %1583 = vmatprep.subr.mxu0 0.0
      %1584 = vmatpush1.msra.mxu0 0.0
      %1585 = vmatprep.subr.mxu0 0.0
      %1586 = vmatpush1.msra.mxu0 0.0
      %1587 = vmatprep.subr.mxu0 0.0
      %1588 = vmatpush1.msra.mxu0 0.0
      %1589 = vmatprep.subr.mxu0 0.0
      %1590 = vmatpush1.msra.mxu0 0.0
      %1591 = vmatprep.subr.mxu0 0.0
      %1592 = vmatpush1.msra.mxu0 0.0
      %1593 = vmatprep.subr.mxu0 0.0
      %1594 = vmatpush1.msra.mxu0 0.0
      %1595 = vmatprep.subr.mxu0 0.0
      %1596 = vmatpush1.msra.mxu0 0.0
      %1597 = vmatprep.subr.mxu0 0.0
      %1598 = vmatpush1.msra.mxu0 0.0
      %1599 = vmatprep.subr.mxu0 0.0
      %1600 = vmatpush1.msra.mxu0 0.0
      %1601 = vmatprep.subr.mxu0 0.0
      %1602 = vmatpush1.msra.mxu0 0.0
      %1603 = vmatprep.subr.mxu0 0.0
      %1604 = vmatpush1.msra.mxu0 0.0
      %1605 = vmatprep.mubr.f32.mxu0 0.0
      %1606 = vmatmul.mubr.f32.gmra.mrb[0].mxu0 %v1539
      %v1607 = vpop.f32.mrb[0].mxu0
      %v1608 = vadd.f32 0.0, %v1607
      %v1609 = vpop.f32.mrb[0].mxu0
      %1610 = vdwg.mxu0
      %v1611 = vadd.f32 %v1532, %v1608
      %v1612 = vld [vmem:[%s1285] sm:$0x7]
      %v1613 = vld [vmem:[%s304] sm:$0xff]
      %v1614 = vld [vmem:[%s304 + $0x8] sm:$0xff]
      %v1615 = vld [vmem:[%s304 + $0x10] sm:$0xff]
      %v1616 = vld [vmem:[%s304 + $0x18] sm:$0xff]
      %v1618 = vsel %vm225, %v1612, 0
      %1620 = vmatprep.subr.mxu0 0.0
      %1621 = vmatpush1.msra.mxu0 %v1613
      %1622 = vmatprep.subr.mxu0 0.0
      %1623 = vmatpush1.msra.mxu0 %v1614
      %1624 = vmatprep.subr.mxu0 0.0
      %1625 = vmatpush1.msra.mxu0 %v1615
      %1626 = vmatprep.subr.mxu0 0.0
      %1627 = vmatpush1.msra.mxu0 %v1616
      %1628 = vmatprep.subr.mxu0 0.0
      %1629 = vmatpush1.msra.mxu0 0.0
      %1630 = vmatprep.subr.mxu0 0.0
      %1631 = vmatpush1.msra.mxu0 0.0
      %1632 = vmatprep.subr.mxu0 0.0
      %1633 = vmatpush1.msra.mxu0 0.0
      %1634 = vmatprep.subr.mxu0 0.0
      %1635 = vmatpush1.msra.mxu0 0.0
      %1636 = vmatprep.subr.mxu0 0.0
      %1637 = vmatpush1.msra.mxu0 0.0
      %1638 = vmatprep.subr.mxu0 0.0
      %1639 = vmatpush1.msra.mxu0 0.0
      %1640 = vmatprep.subr.mxu0 0.0
      %1641 = vmatpush1.msra.mxu0 0.0
      %1642 = vmatprep.subr.mxu0 0.0
      %1643 = vmatpush1.msra.mxu0 0.0
      %1644 = vmatprep.subr.mxu0 0.0
      %1645 = vmatpush1.msra.mxu0 0.0
      %1646 = vmatprep.subr.mxu0 0.0
      %1647 = vmatpush1.msra.mxu0 0.0
      %1648 = vmatprep.subr.mxu0 0.0
      %1649 = vmatpush1.msra.mxu0 0.0
      %1650 = vmatprep.subr.mxu0 0.0
      %1651 = vmatpush1.msra.mxu0 0.0
      %1652 = vmatprep.subr.mxu0 0.0
      %1653 = vmatpush1.msra.mxu0 0.0
      %1654 = vmatprep.subr.mxu0 0.0
      %1655 = vmatpush1.msra.mxu0 0.0
      %1656 = vmatprep.subr.mxu0 0.0
      %1657 = vmatpush1.msra.mxu0 0.0
      %1658 = vmatprep.subr.mxu0 0.0
      %1659 = vmatpush1.msra.mxu0 0.0
      %1660 = vmatprep.subr.mxu0 0.0
      %1661 = vmatpush1.msra.mxu0 0.0
      %1662 = vmatprep.subr.mxu0 0.0
      %1663 = vmatpush1.msra.mxu0 0.0
      %1664 = vmatprep.subr.mxu0 0.0
      %1665 = vmatpush1.msra.mxu0 0.0
      %1666 = vmatprep.subr.mxu0 0.0
      %1667 = vmatpush1.msra.mxu0 0.0
      %1668 = vmatprep.subr.mxu0 0.0
      %1669 = vmatpush1.msra.mxu0 0.0
      %1670 = vmatprep.subr.mxu0 0.0
      %1671 = vmatpush1.msra.mxu0 0.0
      %1672 = vmatprep.subr.mxu0 0.0
      %1673 = vmatpush1.msra.mxu0 0.0
      %1674 = vmatprep.subr.mxu0 0.0
      %1675 = vmatpush1.msra.mxu0 0.0
      %1676 = vmatprep.subr.mxu0 0.0
      %1677 = vmatpush1.msra.mxu0 0.0
      %1678 = vmatprep.subr.mxu0 0.0
      %1679 = vmatpush1.msra.mxu0 0.0
      %1680 = vmatprep.subr.mxu0 0.0
      %1681 = vmatpush1.msra.mxu0 0.0
      %1682 = vmatprep.subr.mxu0 0.0
      %1683 = vmatpush1.msra.mxu0 0.0
      %1684 = vmatprep.mubr.f32.mxu0 0.0
      %1685 = vmatmul.mubr.f32.gmra.mrb[0].mxu0 %v1618
      %v1686 = vpop.f32.mrb[0].mxu0
      %v1687 = vadd.f32 0.0, %v1686
      %v1688 = vpop.f32.mrb[0].mxu0
      %1689 = vdwg.mxu0
      %v1690 = vadd.f32 %v1611, %v1687
      %v1691 = vld [vmem:[%s1367] sm:$0x7]
      %v1692 = vld [vmem:[%s387] sm:$0xff]
      %v1693 = vld [vmem:[%s387 + $0x8] sm:$0xff]
      %v1694 = vld [vmem:[%s387 + $0x10] sm:$0xff]
      %v1695 = vld [vmem:[%s387 + $0x18] sm:$0xff]
      %v1697 = vsel %vm225, %v1691, 0
      %1699 = vmatprep.subr.mxu0 0.0
      %1700 = vmatpush1.msra.mxu0 %v1692
      %1701 = vmatprep.subr.mxu0 0.0
      %1702 = vmatpush1.msra.mxu0 %v1693
      %1703 = vmatprep.subr.mxu0 0.0
      %1704 = vmatpush1.msra.mxu0 %v1694
      %1705 = vmatprep.subr.mxu0 0.0
      %1706 = vmatpush1.msra.mxu0 %v1695
      %1707 = vmatprep.subr.mxu0 0.0
      %1708 = vmatpush1.msra.mxu0 0.0
      %1709 = vmatprep.subr.mxu0 0.0
      %1710 = vmatpush1.msra.mxu0 0.0
      %1711 = vmatprep.subr.mxu0 0.0
      %1712 = vmatpush1.msra.mxu0 0.0
      %1713 = vmatprep.subr.mxu0 0.0
      %1714 = vmatpush1.msra.mxu0 0.0
      %1715 = vmatprep.subr.mxu0 0.0
      %1716 = vmatpush1.msra.mxu0 0.0
      %1717 = vmatprep.subr.mxu0 0.0
      %1718 = vmatpush1.msra.mxu0 0.0
      %1719 = vmatprep.subr.mxu0 0.0
      %1720 = vmatpush1.msra.mxu0 0.0
      %1721 = vmatprep.subr.mxu0 0.0
      %1722 = vmatpush1.msra.mxu0 0.0
      %1723 = vmatprep.subr.mxu0 0.0
      %1724 = vmatpush1.msra.mxu0 0.0
      %1725 = vmatprep.subr.mxu0 0.0
      %1726 = vmatpush1.msra.mxu0 0.0
      %1727 = vmatprep.subr.mxu0 0.0
      %1728 = vmatpush1.msra.mxu0 0.0
      %1729 = vmatprep.subr.mxu0 0.0
      %1730 = vmatpush1.msra.mxu0 0.0
      %1731 = vmatprep.subr.mxu0 0.0
      %1732 = vmatpush1.msra.mxu0 0.0
      %1733 = vmatprep.subr.mxu0 0.0
      %1734 = vmatpush1.msra.mxu0 0.0
      %1735 = vmatprep.subr.mxu0 0.0
      %1736 = vmatpush1.msra.mxu0 0.0
      %1737 = vmatprep.subr.mxu0 0.0
      %1738 = vmatpush1.msra.mxu0 0.0
      %1739 = vmatprep.subr.mxu0 0.0
      %1740 = vmatpush1.msra.mxu0 0.0
      %1741 = vmatprep.subr.mxu0 0.0
      %1742 = vmatpush1.msra.mxu0 0.0
      %1743 = vmatprep.subr.mxu0 0.0
      %1744 = vmatpush1.msra.mxu0 0.0
      %1745 = vmatprep.subr.mxu0 0.0
      %1746 = vmatpush1.msra.mxu0 0.0
      %1747 = vmatprep.subr.mxu0 0.0
      %1748 = vmatpush1.msra.mxu0 0.0
      %1749 = vmatprep.subr.mxu0 0.0
      %1750 = vmatpush1.msra.mxu0 0.0
      %1751 = vmatprep.subr.mxu0 0.0
      %1752 = vmatpush1.msra.mxu0 0.0
      %1753 = vmatprep.subr.mxu0 0.0
      %1754 = vmatpush1.msra.mxu0 0.0
      %1755 = vmatprep.subr.mxu0 0.0
      %1756 = vmatpush1.msra.mxu0 0.0
      %1757 = vmatprep.subr.mxu0 0.0
      %1758 = vmatpush1.msra.mxu0 0.0
      %1759 = vmatprep.subr.mxu0 0.0
      %1760 = vmatpush1.msra.mxu0 0.0
      %1761 = vmatprep.subr.mxu0 0.0
      %1762 = vmatpush1.msra.mxu0 0.0
      %1763 = vmatprep.mubr.f32.mxu0 0.0
      %1764 = vmatmul.mubr.f32.gmra.mrb[0].mxu0 %v1697
      %v1765 = vpop.f32.mrb[0].mxu0
      %v1766 = vadd.f32 0.0, %v1765
      %v1767 = vpop.f32.mrb[0].mxu0
      %1768 = vdwg.mxu0
      %v1769 = vadd.f32 %v1690, %v1766
      %v1770 = vld [vmem:[%s1449] sm:$0x7]
      %v1771 = vld [vmem:[%s470] sm:$0xff]
      %v1772 = vld [vmem:[%s470 + $0x8] sm:$0xff]
      %v1773 = vld [vmem:[%s470 + $0x10] sm:$0xff]
      %v1774 = vld [vmem:[%s470 + $0x18] sm:$0xff]
      %v1776 = vsel %vm225, %v1770, 0
      %1778 = vmatprep.subr.mxu0 0.0
      %1779 = vmatpush1.msra.mxu0 %v1771
      %1780 = vmatprep.subr.mxu0 0.0
      %1781 = vmatpush1.msra.mxu0 %v1772
      %1782 = vmatprep.subr.mxu0 0.0
      %1783 = vmatpush1.msra.mxu0 %v1773
      %1784 = vmatprep.subr.mxu0 0.0
      %1785 = vmatpush1.msra.mxu0 %v1774
      %1786 = vmatprep.subr.mxu0 0.0
      %1787 = vmatpush1.msra.mxu0 0.0
      %1788 = vmatprep.subr.mxu0 0.0
      %1789 = vmatpush1.msra.mxu0 0.0
      %1790 = vmatprep.subr.mxu0 0.0
      %1791 = vmatpush1.msra.mxu0 0.0
      %1792 = vmatprep.subr.mxu0 0.0
      %1793 = vmatpush1.msra.mxu0 0.0
      %1794 = vmatprep.subr.mxu0 0.0
      %1795 = vmatpush1.msra.mxu0 0.0
      %1796 = vmatprep.subr.mxu0 0.0
      %1797 = vmatpush1.msra.mxu0 0.0
      %1798 = vmatprep.subr.mxu0 0.0
      %1799 = vmatpush1.msra.mxu0 0.0
      %1800 = vmatprep.subr.mxu0 0.0
      %1801 = vmatpush1.msra.mxu0 0.0
      %1802 = vmatprep.subr.mxu0 0.0
      %1803 = vmatpush1.msra.mxu0 0.0
      %1804 = vmatprep.subr.mxu0 0.0
      %1805 = vmatpush1.msra.mxu0 0.0
      %1806 = vmatprep.subr.mxu0 0.0
      %1807 = vmatpush1.msra.mxu0 0.0
      %1808 = vmatprep.subr.mxu0 0.0
      %1809 = vmatpush1.msra.mxu0 0.0
      %1810 = vmatprep.subr.mxu0 0.0
      %1811 = vmatpush1.msra.mxu0 0.0
      %1812 = vmatprep.subr.mxu0 0.0
      %1813 = vmatpush1.msra.mxu0 0.0
      %1814 = vmatprep.subr.mxu0 0.0
      %1815 = vmatpush1.msra.mxu0 0.0
      %1816 = vmatprep.subr.mxu0 0.0
      %1817 = vmatpush1.msra.mxu0 0.0
      %1818 = vmatprep.subr.mxu0 0.0
      %1819 = vmatpush1.msra.mxu0 0.0
      %1820 = vmatprep.subr.mxu0 0.0
      %1821 = vmatpush1.msra.mxu0 0.0
      %1822 = vmatprep.subr.mxu0 0.0
      %1823 = vmatpush1.msra.mxu0 0.0
      %1824 = vmatprep.subr.mxu0 0.0
      %1825 = vmatpush1.msra.mxu0 0.0
      %1826 = vmatprep.subr.mxu0 0.0
      %1827 = vmatpush1.msra.mxu0 0.0
      %1828 = vmatprep.subr.mxu0 0.0
      %1829 = vmatpush1.msra.mxu0 0.0
      %1830 = vmatprep.subr.mxu0 0.0
      %1831 = vmatpush1.msra.mxu0 0.0
      %1832 = vmatprep.subr.mxu0 0.0
      %1833 = vmatpush1.msra.mxu0 0.0
      %1834 = vmatprep.subr.mxu0 0.0
      %1835 = vmatpush1.msra.mxu0 0.0
      %1836 = vmatprep.subr.mxu0 0.0
      %1837 = vmatpush1.msra.mxu0 0.0
      %1838 = vmatprep.subr.mxu0 0.0
      %1839 = vmatpush1.msra.mxu0 0.0
      %1840 = vmatprep.subr.mxu0 0.0
      %1841 = vmatpush1.msra.mxu0 0.0
      %1842 = vmatprep.mubr.f32.mxu0 0.0
      %1843 = vmatmul.mubr.f32.gmra.mrb[0].mxu0 %v1776
      %v1844 = vpop.f32.mrb[0].mxu0
      %v1845 = vadd.f32 0.0, %v1844
      %v1846 = vpop.f32.mrb[0].mxu0
      %1847 = vdwg.mxu0
      %v1848 = vadd.f32 %v1769, %v1845
      %s1849 = sadd.s32 %s216, 12
      %s1850 = smul.u32 %s1849, 4
      %s1851 = scalar_lea.vmem %s199, %s1850
      %v1852 = vld [vmem:[%s1851] sm:$0x7]
      %v1853 = vld [vmem:[%s553] sm:$0xff]
      %v1854 = vld [vmem:[%s553 + $0x8] sm:$0xff]
      %v1855 = vld [vmem:[%s553 + $0x10] sm:$0xff]
      %v1856 = vld [vmem:[%s553 + $0x18] sm:$0xff]
      %v1858 = vsel %vm225, %v1852, 0
      %1860 = vmatprep.subr.mxu0 0.0
      %1861 = vmatpush1.msra.mxu0 %v1853
      %1862 = vmatprep.subr.mxu0 0.0
      %1863 = vmatpush1.msra.mxu0 %v1854
      %1864 = vmatprep.subr.mxu0 0.0
      %1865 = vmatpush1.msra.mxu0 %v1855
      %1866 = vmatprep.subr.mxu0 0.0
      %1867 = vmatpush1.msra.mxu0 %v1856
      %1868 = vmatprep.subr.mxu0 0.0
      %1869 = vmatpush1.msra.mxu0 0.0
      %1870 = vmatprep.subr.mxu0 0.0
      %1871 = vmatpush1.msra.mxu0 0.0
      %1872 = vmatprep.subr.mxu0 0.0
      %1873 = vmatpush1.msra.mxu0 0.0
      %1874 = vmatprep.subr.mxu0 0.0
      %1875 = vmatpush1.msra.mxu0 0.0
      %1876 = vmatprep.subr.mxu0 0.0
      %1877 = vmatpush1.msra.mxu0 0.0
      %1878 = vmatprep.subr.mxu0 0.0
      %1879 = vmatpush1.msra.mxu0 0.0
      %1880 = vmatprep.subr.mxu0 0.0
      %1881 = vmatpush1.msra.mxu0 0.0
      %1882 = vmatprep.subr.mxu0 0.0
      %1883 = vmatpush1.msra.mxu0 0.0
      %1884 = vmatprep.subr.mxu0 0.0
      %1885 = vmatpush1.msra.mxu0 0.0
      %1886 = vmatprep.subr.mxu0 0.0
      %1887 = vmatpush1.msra.mxu0 0.0
      %1888 = vmatprep.subr.mxu0 0.0
      %1889 = vmatpush1.msra.mxu0 0.0
      %1890 = vmatprep.subr.mxu0 0.0
      %1891 = vmatpush1.msra.mxu0 0.0
      %1892 = vmatprep.subr.mxu0 0.0
      %1893 = vmatpush1.msra.mxu0 0.0
      %1894 = vmatprep.subr.mxu0 0.0
      %1895 = vmatpush1.msra.mxu0 0.0
      %1896 = vmatprep.subr.mxu0 0.0
      %1897 = vmatpush1.msra.mxu0 0.0
      %1898 = vmatprep.subr.mxu0 0.0
      %1899 = vmatpush1.msra.mxu0 0.0
      %1900 = vmatprep.subr.mxu0 0.0
      %1901 = vmatpush1.msra.mxu0 0.0
      %1902 = vmatprep.subr.mxu0 0.0
      %1903 = vmatpush1.msra.mxu0 0.0
      %1904 = vmatprep.subr.mxu0 0.0
      %1905 = vmatpush1.msra.mxu0 0.0
      %1906 = vmatprep.subr.mxu0 0.0
      %1907 = vmatpush1.msra.mxu0 0.0
      %1908 = vmatprep.subr.mxu0 0.0
      %1909 = vmatpush1.msra.mxu0 0.0
      %1910 = vmatprep.subr.mxu0 0.0
      %1911 = vmatpush1.msra.mxu0 0.0
      %1912 = vmatprep.subr.mxu0 0.0
      %1913 = vmatpush1.msra.mxu0 0.0
      %1914 = vmatprep.subr.mxu0 0.0
      %1915 = vmatpush1.msra.mxu0 0.0
      %1916 = vmatprep.subr.mxu0 0.0
      %1917 = vmatpush1.msra.mxu0 0.0
      %1918 = vmatprep.subr.mxu0 0.0
      %1919 = vmatpush1.msra.mxu0 0.0
      %1920 = vmatprep.subr.mxu0 0.0
      %1921 = vmatpush1.msra.mxu0 0.0
      %1922 = vmatprep.subr.mxu0 0.0
      %1923 = vmatpush1.msra.mxu0 0.0
      %1924 = vmatprep.mubr.f32.mxu0 0.0
      %1925 = vmatmul.mubr.f32.gmra.mrb[0].mxu0 %v1858
      %v1926 = vpop.f32.mrb[0].mxu0
      %v1927 = vadd.f32 0.0, %v1926
      %v1928 = vpop.f32.mrb[0].mxu0
      %1929 = vdwg.mxu0
      %v1930 = vadd.f32 %v1848, %v1927
      %s1931 = sadd.s32 %s216, 13
      %s1932 = smul.u32 %s1931, 4
      %s1933 = scalar_lea.vmem %s199, %s1932
      %v1934 = vld [vmem:[%s1933] sm:$0x7]
      %v1935 = vld [vmem:[%s636] sm:$0xff]
      %v1936 = vld [vmem:[%s636 + $0x8] sm:$0xff]
      %v1937 = vld [vmem:[%s636 + $0x10] sm:$0xff]
      %v1938 = vld [vmem:[%s636 + $0x18] sm:$0xff]
      %v1940 = vsel %vm225, %v1934, 0
      %1942 = vmatprep.subr.mxu0 0.0
      %1943 = vmatpush1.msra.mxu0 %v1935
      %1944 = vmatprep.subr.mxu0 0.0
      %1945 = vmatpush1.msra.mxu0 %v1936
      %1946 = vmatprep.subr.mxu0 0.0
      %1947 = vmatpush1.msra.mxu0 %v1937
      %1948 = vmatprep.subr.mxu0 0.0
      %1949 = vmatpush1.msra.mxu0 %v1938
      %1950 = vmatprep.subr.mxu0 0.0
      %1951 = vmatpush1.msra.mxu0 0.0
      %1952 = vmatprep.subr.mxu0 0.0
      %1953 = vmatpush1.msra.mxu0 0.0
      %1954 = vmatprep.subr.mxu0 0.0
      %1955 = vmatpush1.msra.mxu0 0.0
      %1956 = vmatprep.subr.mxu0 0.0
      %1957 = vmatpush1.msra.mxu0 0.0
      %1958 = vmatprep.subr.mxu0 0.0
      %1959 = vmatpush1.msra.mxu0 0.0
      %1960 = vmatprep.subr.mxu0 0.0
      %1961 = vmatpush1.msra.mxu0 0.0
      %1962 = vmatprep.subr.mxu0 0.0
      %1963 = vmatpush1.msra.mxu0 0.0
      %1964 = vmatprep.subr.mxu0 0.0
      %1965 = vmatpush1.msra.mxu0 0.0
      %1966 = vmatprep.subr.mxu0 0.0
      %1967 = vmatpush1.msra.mxu0 0.0
      %1968 = vmatprep.subr.mxu0 0.0
      %1969 = vmatpush1.msra.mxu0 0.0
      %1970 = vmatprep.subr.mxu0 0.0
      %1971 = vmatpush1.msra.mxu0 0.0
      %1972 = vmatprep.subr.mxu0 0.0
      %1973 = vmatpush1.msra.mxu0 0.0
      %1974 = vmatprep.subr.mxu0 0.0
      %1975 = vmatpush1.msra.mxu0 0.0
      %1976 = vmatprep.subr.mxu0 0.0
      %1977 = vmatpush1.msra.mxu0 0.0
      %1978 = vmatprep.subr.mxu0 0.0
      %1979 = vmatpush1.msra.mxu0 0.0
      %1980 = vmatprep.subr.mxu0 0.0
      %1981 = vmatpush1.msra.mxu0 0.0
      %1982 = vmatprep.subr.mxu0 0.0
      %1983 = vmatpush1.msra.mxu0 0.0
      %1984 = vmatprep.subr.mxu0 0.0
      %1985 = vmatpush1.msra.mxu0 0.0
      %1986 = vmatprep.subr.mxu0 0.0
      %1987 = vmatpush1.msra.mxu0 0.0
      %1988 = vmatprep.subr.mxu0 0.0
      %1989 = vmatpush1.msra.mxu0 0.0
      %1990 = vmatprep.subr.mxu0 0.0
      %1991 = vmatpush1.msra.mxu0 0.0
      %1992 = vmatprep.subr.mxu0 0.0
      %1993 = vmatpush1.msra.mxu0 0.0
      %1994 = vmatprep.subr.mxu0 0.0
      %1995 = vmatpush1.msra.mxu0 0.0
      %1996 = vmatprep.subr.mxu0 0.0
      %1997 = vmatpush1.msra.mxu0 0.0
      %1998 = vmatprep.subr.mxu0 0.0
      %1999 = vmatpush1.msra.mxu0 0.0
      %2000 = vmatprep.subr.mxu0 0.0
      %2001 = vmatpush1.msra.mxu0 0.0
      %2002 = vmatprep.subr.mxu0 0.0
      %2003 = vmatpush1.msra.mxu0 0.0
      %2004 = vmatprep.subr.mxu0 0.0
      %2005 = vmatpush1.msra.mxu0 0.0
      %2006 = vmatprep.mubr.f32.mxu0 0.0
      %2007 = vmatmul.mubr.f32.gmra.mrb[0].mxu0 %v1940
      %v2008 = vpop.f32.mrb[0].mxu0
      %v2009 = vadd.f32 0.0, %v2008
      %v2010 = vpop.f32.mrb[0].mxu0
      %2011 = vdwg.mxu0
      %v2012 = vadd.f32 %v1930, %v2009
      %s2013 = sadd.s32 %s216, 14
      %s2014 = smul.u32 %s2013, 4
      %s2015 = scalar_lea.vmem %s199, %s2014
      %v2016 = vld [vmem:[%s2015] sm:$0x7]
      %v2017 = vld [vmem:[%s719] sm:$0xff]
      %v2018 = vld [vmem:[%s719 + $0x8] sm:$0xff]
      %v2019 = vld [vmem:[%s719 + $0x10] sm:$0xff]
      %v2020 = vld [vmem:[%s719 + $0x18] sm:$0xff]
      %v2022 = vsel %vm225, %v2016, 0
      %2024 = vmatprep.subr.mxu0 0.0
      %2025 = vmatpush1.msra.mxu0 %v2017
      %2026 = vmatprep.subr.mxu0 0.0
      %2027 = vmatpush1.msra.mxu0 %v2018
      %2028 = vmatprep.subr.mxu0 0.0
      %2029 = vmatpush1.msra.mxu0 %v2019
      %2030 = vmatprep.subr.mxu0 0.0
      %2031 = vmatpush1.msra.mxu0 %v2020
      %2032 = vmatprep.subr.mxu0 0.0
      %2033 = vmatpush1.msra.mxu0 0.0
      %2034 = vmatprep.subr.mxu0 0.0
      %2035 = vmatpush1.msra.mxu0 0.0
      %2036 = vmatprep.subr.mxu0 0.0
      %2037 = vmatpush1.msra.mxu0 0.0
      %2038 = vmatprep.subr.mxu0 0.0
      %2039 = vmatpush1.msra.mxu0 0.0
      %2040 = vmatprep.subr.mxu0 0.0
      %2041 = vmatpush1.msra.mxu0 0.0
      %2042 = vmatprep.subr.mxu0 0.0
      %2043 = vmatpush1.msra.mxu0 0.0
      %2044 = vmatprep.subr.mxu0 0.0
      %2045 = vmatpush1.msra.mxu0 0.0
      %2046 = vmatprep.subr.mxu0 0.0
      %2047 = vmatpush1.msra.mxu0 0.0
      %2048 = vmatprep.subr.mxu0 0.0
      %2049 = vmatpush1.msra.mxu0 0.0
      %2050 = vmatprep.subr.mxu0 0.0
      %2051 = vmatpush1.msra.mxu0 0.0
      %2052 = vmatprep.subr.mxu0 0.0
      %2053 = vmatpush1.msra.mxu0 0.0
      %2054 = vmatprep.subr.mxu0 0.0
      %2055 = vmatpush1.msra.mxu0 0.0
      %2056 = vmatprep.subr.mxu0 0.0
      %2057 = vmatpush1.msra.mxu0 0.0
      %2058 = vmatprep.subr.mxu0 0.0
      %2059 = vmatpush1.msra.mxu0 0.0
      %2060 = vmatprep.subr.mxu0 0.0
      %2061 = vmatpush1.msra.mxu0 0.0
      %2062 = vmatprep.subr.mxu0 0.0
      %2063 = vmatpush1.msra.mxu0 0.0
      %2064 = vmatprep.subr.mxu0 0.0
      %2065 = vmatpush1.msra.mxu0 0.0
      %2066 = vmatprep.subr.mxu0 0.0
      %2067 = vmatpush1.msra.mxu0 0.0
      %2068 = vmatprep.subr.mxu0 0.0
      %2069 = vmatpush1.msra.mxu0 0.0
      %2070 = vmatprep.subr.mxu0 0.0
      %2071 = vmatpush1.msra.mxu0 0.0
      %2072 = vmatprep.subr.mxu0 0.0
      %2073 = vmatpush1.msra.mxu0 0.0
      %2074 = vmatprep.subr.mxu0 0.0
      %2075 = vmatpush1.msra.mxu0 0.0
      %2076 = vmatprep.subr.mxu0 0.0
      %2077 = vmatpush1.msra.mxu0 0.0
      %2078 = vmatprep.subr.mxu0 0.0
      %2079 = vmatpush1.msra.mxu0 0.0
      %2080 = vmatprep.subr.mxu0 0.0
      %2081 = vmatpush1.msra.mxu0 0.0
      %2082 = vmatprep.subr.mxu0 0.0
      %2083 = vmatpush1.msra.mxu0 0.0
      %2084 = vmatprep.subr.mxu0 0.0
      %2085 = vmatpush1.msra.mxu0 0.0
      %2086 = vmatprep.subr.mxu0 0.0
      %2087 = vmatpush1.msra.mxu0 0.0
      %2088 = vmatprep.mubr.f32.mxu0 0.0
      %2089 = vmatmul.mubr.f32.gmra.mrb[0].mxu0 %v2022
      %v2090 = vpop.f32.mrb[0].mxu0
      %v2091 = vadd.f32 0.0, %v2090
      %v2092 = vpop.f32.mrb[0].mxu0
      %2093 = vdwg.mxu0
      %v2094 = vadd.f32 %v2012, %v2091
      %s2095 = sadd.s32 %s216, 15
      %s2096 = smul.u32 %s2095, 4
      %s2097 = scalar_lea.vmem %s199, %s2096
      %v2098 = vld [vmem:[%s2097] sm:$0x7]
      %v2099 = vld [vmem:[%s802] sm:$0xff]
      %v2100 = vld [vmem:[%s802 + $0x8] sm:$0xff]
      %v2101 = vld [vmem:[%s802 + $0x10] sm:$0xff]
      %v2102 = vld [vmem:[%s802 + $0x18] sm:$0xff]
      %v2104 = vsel %vm225, %v2098, 0
      %2106 = vmatprep.subr.mxu0 0.0
      %2107 = vmatpush1.msra.mxu0 %v2099
      %2108 = vmatprep.subr.mxu0 0.0
      %2109 = vmatpush1.msra.mxu0 %v2100
      %2110 = vmatprep.subr.mxu0 0.0
      %2111 = vmatpush1.msra.mxu0 %v2101
      %2112 = vmatprep.subr.mxu0 0.0
      %2113 = vmatpush1.msra.mxu0 %v2102
      %2114 = vmatprep.subr.mxu0 0.0
      %2115 = vmatpush1.msra.mxu0 0.0
      %2116 = vmatprep.subr.mxu0 0.0
      %2117 = vmatpush1.msra.mxu0 0.0
      %2118 = vmatprep.subr.mxu0 0.0
      %2119 = vmatpush1.msra.mxu0 0.0
      %2120 = vmatprep.subr.mxu0 0.0
      %2121 = vmatpush1.msra.mxu0 0.0
      %2122 = vmatprep.subr.mxu0 0.0
      %2123 = vmatpush1.msra.mxu0 0.0
      %2124 = vmatprep.subr.mxu0 0.0
      %2125 = vmatpush1.msra.mxu0 0.0
      %2126 = vmatprep.subr.mxu0 0.0
      %2127 = vmatpush1.msra.mxu0 0.0
      %2128 = vmatprep.subr.mxu0 0.0
      %2129 = vmatpush1.msra.mxu0 0.0
      %2130 = vmatprep.subr.mxu0 0.0
      %2131 = vmatpush1.msra.mxu0 0.0
      %2132 = vmatprep.subr.mxu0 0.0
      %2133 = vmatpush1.msra.mxu0 0.0
      %2134 = vmatprep.subr.mxu0 0.0
      %2135 = vmatpush1.msra.mxu0 0.0
      %2136 = vmatprep.subr.mxu0 0.0
      %2137 = vmatpush1.msra.mxu0 0.0
      %2138 = vmatprep.subr.mxu0 0.0
      %2139 = vmatpush1.msra.mxu0 0.0
      %2140 = vmatprep.subr.mxu0 0.0
      %2141 = vmatpush1.msra.mxu0 0.0
      %2142 = vmatprep.subr.mxu0 0.0
      %2143 = vmatpush1.msra.mxu0 0.0
      %2144 = vmatprep.subr.mxu0 0.0
      %2145 = vmatpush1.msra.mxu0 0.0
      %2146 = vmatprep.subr.mxu0 0.0
      %2147 = vmatpush1.msra.mxu0 0.0
      %2148 = vmatprep.subr.mxu0 0.0
      %2149 = vmatpush1.msra.mxu0 0.0
      %2150 = vmatprep.subr.mxu0 0.0
      %2151 = vmatpush1.msra.mxu0 0.0
      %2152 = vmatprep.subr.mxu0 0.0
      %2153 = vmatpush1.msra.mxu0 0.0
      %2154 = vmatprep.subr.mxu0 0.0
      %2155 = vmatpush1.msra.mxu0 0.0
      %2156 = vmatprep.subr.mxu0 0.0
      %2157 = vmatpush1.msra.mxu0 0.0
      %2158 = vmatprep.subr.mxu0 0.0
      %2159 = vmatpush1.msra.mxu0 0.0
      %2160 = vmatprep.subr.mxu0 0.0
      %2161 = vmatpush1.msra.mxu0 0.0
      %2162 = vmatprep.subr.mxu0 0.0
      %2163 = vmatpush1.msra.mxu0 0.0
      %2164 = vmatprep.subr.mxu0 0.0
      %2165 = vmatpush1.msra.mxu0 0.0
      %2166 = vmatprep.subr.mxu0 0.0
      %2167 = vmatpush1.msra.mxu0 0.0
      %2168 = vmatprep.subr.mxu0 0.0
      %2169 = vmatpush1.msra.mxu0 0.0
      %2170 = vmatprep.mubr.f32.mxu0 0.0
      %2171 = vmatmul.mubr.f32.gmra.mrb[0].mxu0 %v2104
      %v2172 = vpop.f32.mrb[0].mxu0
      %v2173 = vadd.f32 0.0, %v2172
      %v2174 = vpop.f32.mrb[0].mxu0
      %2175 = vdwg.mxu0
      %v2176 = vadd.f32 %v2094, %v2173
      %s2177 = scalar_lea.vmem %s214, 8
      %2178 = vst.msk [vmem:[%s2177] sm:$0x7] %vm881, %v2176
      %s2179 = smul.u32 3, %s19
      %p2180 = scmp.lt.s32.totalorder %s18, 1
      %s2181 = scalar_select %p2180, %s18, 1
      %p2182 = scmp.lt.s32.totalorder %s2179, 2
      %s2183 = scalar_select %p2182, %s2179, 2
      %s2184 = smul.addr %s2181, 3
      %s2185 = sadd.s32 %s2183, %s2184
      %s2186 = smul.addr %s2185, 4
      %s2187 = scalar_lea.vmem %s3, %s2186
      // Predicated region
      $region33: #{a_call__.1} parent=31 // pred_check
        %p2188 = pneg %p119
      $region34: #{a_call__.1} parent=31 // pred_check_branch
        %2190 = sbr.rel (%p2188) target = $region36
      $region35: #{a_call__.1} parent=31 // pred_region
        %s2191 = smul.u32 3, %s19
      $region36: #{a_call__.1} parent=31 // pred_fallthru
        _
    $region32: #{a_call__.1} parent=5 // pred_fallthru
      _
    %p2192 = scmp.le.s32.totalorder 2, %s9
    // Predicated region
    $region37: #{a_call__.1} parent=5 // pred_check
      %p2193 = pneg %p2192
    $region38: #{a_call__.1} parent=5 // pred_check_branch
      %2195 = sbr.rel (%p2193) target = $region40
    $region39: #{a_call__.1} parent=5 // pred_region
      %s2196 = ssub.s32 %s9, 2
      // Predicated region
      $region41: #{a_call__.1} parent=39 // pred_check
        %p2197 = pneg %p125
      $region42: #{a_call__.1} parent=39 // pred_check_branch
        %2199 = sbr.rel (%p2197) target = $region44
      $region43: #{a_call__.1} parent=39 // pred_region
        %s2200 = smul.u32 3, %s21
        %p2201 = scmp.lt.s32.totalorder %s20, 1
        %s2202 = scalar_select %p2201, %s20, 1
        %p2203 = scmp.lt.s32.totalorder %s2200, 2
        %s2204 = scalar_select %p2203, %s2200, 2
        %s2205 = smul.addr %s2202, 3
        %s2206 = sadd.s32 %s2204, %s2205
        %s2207 = smul.addr %s2206, 4
        %s2208 = scalar_lea.vmem %s3, %s2207
      $region44: #{a_call__.1} parent=39 // pred_fallthru
        _
    $region40: #{a_call__.1} parent=5 // pred_fallthru
      _
  $region6: #{a_call__.1} parent=0 // loop_footer
    %s13 = sadd.s32 1, %s9
  $region7: #{a_call__.1} parent=0 // loop_footer_branch
    %8 = sbr.rel target = $region3
  $region8: #{a_call__.1} parent=0 // loop_exit
    _

</llo_original>
